<compile_context>
chip_gen: v6e
topology: v6e:2x2x1
jax: 0.10.0
libtpu: 0.0.40
codegen_flags: <defaults>
</compile_context>

<pallas_src>
import functools

import jax
import jax.numpy as jnp
from jax import lax
from jax.experimental import pallas as pl
from jax.experimental.pallas import tpu as pltpu


def _round_up(v, m):
    return ((v + m - 1) // m) * m


def _conv3x3_bias_relu_kernel(x_ref, w_ref, b_ref, o_ref, *, TH, WP, C, Cout, use_concat):
    # x_ref : (1, 1, TH+2, WP+2, C)  zero-padded NHWC input band (one batch elem, one row tile)
    # w_ref : (9, C, Cout)           tap-major weights, tap index = ky*3 + kx
    # b_ref : (1, Cout)              bias (f32)
    # o_ref : (1, TH, WP, Cout)      conv output tile (pre pixel-shuffle), ReLU applied
    x = x_ref[0, 0]                                          # (TH+2, WP+2, C)

    if use_concat:
        # C is a multiple of 128: lane-axis concat im2col -> single MXU matmul with K = 9C.
        taps = []
        for ky in range(3):
            for kx in range(3):
                taps.append(x[ky:ky + TH, kx:kx + WP, :])     # (TH, WP, C)
        patch = jnp.concatenate(taps, axis=-1).reshape(TH * WP, 9 * C)
        w_mat = w_ref[...].reshape(9 * C, Cout)
        acc = jnp.dot(patch, w_mat, preferred_element_type=jnp.float32)
    else:
        # General C: nine accumulating K=C matmuls — no cross-lane concat, no 9x patch buffer.
        acc = None
        for ky in range(3):
            for kx in range(3):
                tap = x[ky:ky + TH, kx:kx + WP, :].reshape(TH * WP, C)
                part = jnp.dot(tap, w_ref[ky * 3 + kx], preferred_element_type=jnp.float32)
                acc = part if acc is None else acc + part

    acc = acc + b_ref[0].astype(jnp.float32)
    acc = jnp.maximum(acc, 0.0)
    o_ref[...] = acc.reshape(1, TH, WP, Cout).astype(o_ref.dtype)


def _plan_tiles(H, WP, C, Cout, in_item, out_item, use_concat, N, tile_h=None):
    """Pick the row-tile height and an explicit scoped-VMEM limit, generation-aware."""
    lane = lambda c: _round_up(c, 128)       # lane padding (last dim)
    sub = lambda s: _round_up(s, 8)          # sublane padding (second-to-last dim)

    try:
        vmem_cap = int(pltpu.get_tpu_info().vmem_capacity_bytes)
    except Exception:
        vmem_cap = 64 * 1024 * 1024          # conservative fallback (v7x-sized)

    budget = int(vmem_cap * 0.55)            # ~70 MiB on 128 MiB parts, ~35 MiB on v7x

    # Residents that do not scale with TH: weights (double-buffered), bias, Mosaic scratch.
    fixed = 2 * 9 * sub(C) * lane(Cout) * in_item + 2 * 8 * lane(Cout) * 4 + (2 << 20)

    # Per-TH-row bytes, counting lane/sublane padding of every materialized buffer.
    in_row = 2 * sub(WP + 2) * lane(C) * in_item                 # double-buffered input band
    if use_concat:
        tap_row = (9 * sub(WP) * lane(C) + sub(WP) * lane(9 * C)) * in_item   # taps + patch
    else:
        tap_row = 3 * sub(WP) * lane(C) * in_item                # live shifted tap copies
    acc_row = sub(WP) * lane(Cout) * 4                           # f32 accumulator
    out_row = 2 * sub(WP) * lane(Cout) * out_item                # double-buffered conv output
    per_row = in_row + tap_row + acc_row + out_row
    halo = 2 * in_row                                            # the +2 halo rows of the band

    if tile_h is None:
        th = (budget - fixed - halo) // per_row
        th = max(1, min(int(th), 512, _round_up(H, 8)))
        if th >= 8:
            th -= th % 8
        if N == 1 and H > 8 and th >= H:
            # Keep >= 2 row tiles so a megacore part can split the grid for batch-1 inputs.
            th = max(8, _round_up(-(-H // 2), 8))
    else:
        th = int(max(1, min(tile_h, _round_up(H, 8))))

    est = fixed + halo + per_row * th
    vmem_limit = min(int(vmem_cap * 0.75), max(32 * 1024 * 1024, int(est * 1.4)))
    vmem_limit = max(vmem_limit, int(est * 1.1))
    vmem_limit = min(vmem_limit, vmem_cap - (2 << 20))
    return th, int(vmem_limit)


def upsample_block_forward(x_nchw, weight_oihw, bias, upscale_factor, *,
                           tile_h=None, compute_dtype=jnp.bfloat16, conv_out_dtype=None):
    """Forward pass of UpsampleBlock.

    x_nchw      : (N, C, H, W)
    weight_oihw : (C*r*r, C, 3, 3)  PyTorch Conv2d weight layout
    bias        : (C*r*r,)
    returns     : (N, C, H*r, W*r)  (NCHW, matching PyTorch)
    """
    r = int(upscale_factor)
    N, C, H, W = x_nchw.shape
    Cout = C * r * r
    assert weight_oihw.shape == (Cout, C, 3, 3)
    assert bias.shape == (Cout,)

    out_dtype = x_nchw.dtype
    cdt = jnp.dtype(compute_dtype) if compute_dtype is not None else jnp.dtype(out_dtype)
    odt = jnp.dtype(conv_out_dtype) if conv_out_dtype is not None else jnp.dtype(out_dtype)

    WP = _round_up(max(W, 8), 8)                 # pad W so in-kernel reshapes stay layout-free
    use_concat = (C % 128 == 0)

    TH, vmem_limit = _plan_tiles(H, WP, C, Cout, cdt.itemsize, odt.itemsize,
                                 use_concat, N, tile_h=tile_h)
    HT = -(-H // TH)                             # ceil(H / TH)
    H_pad = HT * TH

    # NCHW -> NHWC, cast to compute dtype (bf16 default), zero-pad: 1 halo row/col per side
    # plus extra rows/cols to reach (H_pad, WP).
    x_nhwc = jnp.transpose(x_nchw, (0, 2, 3, 1)).astype(cdt)
    x_padded = jnp.pad(x_nhwc, ((0, 0), (1, 1 + H_pad - H), (1, 1 + WP - W), (0, 0)))

    # Overlapping (TH+2)-row bands so each grid step carries its row halo with plain Blocked
    # BlockSpecs (robust lowering, auto double-buffering, megacore-safe with 2 parallel axes).
    # TODO(synk): element-offset windows / in-kernel band DMA would remove this extra
    # input-sized HBM pass (~5% of total traffic at r=2).
    row_idx = (jnp.arange(HT, dtype=jnp.int32)[:, None] * TH
               + jnp.arange(TH + 2, dtype=jnp.int32)[None, :])        # (HT, TH+2)
    x_tiles = x_padded[:, row_idx]                                     # (N, HT, TH+2, WP+2, C)

    # OIHW -> tap-major (9, C, Cout); output-channel order preserved (PyTorch order).
    w_taps = jnp.transpose(weight_oihw, (2, 3, 1, 0)).reshape(9, C, Cout).astype(cdt)
    b2d = bias.reshape(1, Cout).astype(jnp.float32)

    kernel = functools.partial(_conv3x3_bias_relu_kernel, TH=TH, WP=WP, C=C, Cout=Cout,
                               use_concat=use_concat)

    conv = pl.pallas_call(
        kernel,
        out_shape=jax.ShapeDtypeStruct((N, H_pad, WP, Cout), odt),
        grid_spec=pltpu.PrefetchScalarGridSpec(
            num_scalar_prefetch=0,
            grid=(N, HT),
            in_specs=[
                pl.BlockSpec((1, 1, TH + 2, WP + 2, C), lambda n, t: (n, t, 0, 0, 0)),
                pl.BlockSpec((9, C, Cout), lambda n, t: (0, 0, 0)),
                pl.BlockSpec((1, Cout), lambda n, t: (0, 0)),
            ],
            out_specs=pl.BlockSpec((1, TH, WP, Cout), lambda n, t: (n, t, 0, 0)),
        ),
        compiler_params=pltpu.CompilerParams(
            dimension_semantics=("parallel", "parallel"),
            vmem_limit_bytes=vmem_limit,
        ),
    )(x_tiles, w_taps, b2d)

    # PixelShuffle(r) + NHWC->NCHW, fused into a single XLA permutation:
    #   out[n, c, h*r+i, w*r+j] = conv[n, h, w, c*r*r + i*r + j]
    # TODO(synk): storing the shuffled NCHW tile directly from the kernel would cut the
    # output path from 3 HBM passes to 1 but needs an in-kernel cross-lane relayout.
    y = conv[:, :H, :W, :].reshape(N, H, W, C, r, r)
    y = jnp.transpose(y, (0, 3, 1, 4, 2, 5)).reshape(N, C, H * r, W * r)
    return y.astype(out_dtype)


def _reference_forward(x_nchw, weight_oihw, bias, r):
    """Pure-JAX reference (lax.conv) for correctness check."""
    y = lax.conv_general_dilated(
        x_nchw, weight_oihw,
        window_strides=(1, 1), padding=((1, 1), (1, 1)),
        dimension_numbers=("NCHW", "OIHW", "NCHW"),
    ) + bias.reshape(1, -1, 1, 1)
    N, Cout, H, W = y.shape
    C = Cout // (r * r)
    y = y.reshape(N, C, r, r, H, W)
    y = jnp.transpose(y, (0, 1, 4, 2, 5, 3)).reshape(N, C, H * r, W * r)
    return jnp.maximum(y, 0.0)


if __name__ == "__main__":
    # Small deterministic example consistent with the module.
    N, C, H, W = 2, 4, 16, 16
    r = 2
    Cout = C * r * r

    key = jax.random.PRNGKey(0)
    kx_, kw_, kb_ = jax.random.split(key, 3)
    x = jax.random.normal(kx_, (N, C, H, W), dtype=jnp.float32)
    weight = jax.random.normal(kw_, (Cout, C, 3, 3), dtype=jnp.float32) * 0.1
    bias = jax.random.normal(kb_, (Cout,), dtype=jnp.float32) * 0.1

    ref = _reference_forward(x, weight, bias, r)

    # f32 compute, forced small tiles (exercises halo handling, grid=(2, 2)).
    out_f32 = jax.block_until_ready(
        upsample_block_forward(x, weight, bias, r, tile_h=8, compute_dtype=jnp.float32))
    assert out_f32.shape == (N, C, H * r, W * r)
    assert jnp.allclose(out_f32, ref, atol=1e-3, rtol=1e-3)

    # Default path: bf16 compute (MXU-native), auto tile size, generation-aware VMEM budget.
    out_bf16 = jax.block_until_ready(upsample_block_forward(x, weight, bias, r))
    assert jnp.allclose(out_bf16, ref, atol=5e-2, rtol=5e-2)

    # Batch-1 input: auto tiling keeps >= 2 row tiles so both megacore TCs get work.
    out_n1 = jax.block_until_ready(
        upsample_block_forward(x[:1], weight, bias, r, compute_dtype=jnp.float32))
    assert jnp.allclose(out_n1, ref[:1], atol=1e-3, rtol=1e-3)

    # Optional bf16 conv-output intermediate (halves the epilogue read) — loose tolerance.
    out_lo = jax.block_until_ready(
        upsample_block_forward(x, weight, bias, r, conv_out_dtype=jnp.bfloat16))
    assert jnp.allclose(out_lo, ref, atol=5e-2, rtol=5e-2)

    print("KERNEL_OK")
</pallas_src>

<mosaic_0001>
module attributes {stable_mosaic.version = 11 : i64} {
  func.func @_conv3x3_bias_relu_kernel(%arg0: i32, %arg1: i32, %arg2: memref<1x1x10x18x4xf32, #tpu.memory_space<vmem>>, %arg3: memref<9x4x16xf32, #tpu.memory_space<vmem>>, %arg4: memref<1x16xf32, #tpu.memory_space<vmem>>, %arg5: memref<1x8x16x16xf32, #tpu.memory_space<vmem>>) attributes {dimension_semantics = [#tpu.dimension_semantics<parallel>, #tpu.dimension_semantics<parallel>], iteration_bounds = array<i64: 2, 2>, scalar_prefetch = 0 : i64, scratch_operands = 0 : i64, tpu.core_type = #tpu.core_type<tc>, window_params = [{transform_indices = @transform_0, window_bounds = array<i64: 1, 1, 10, 18, 4>}, {pipeline_mode = #tpu.pipeline_mode<synchronous>, transform_indices = @transform_1, window_bounds = array<i64: 9, 4, 16>}, {pipeline_mode = #tpu.pipeline_mode<synchronous>, transform_indices = @transform_2, window_bounds = array<i64: 1, 16>}, {transform_indices = @transform_3, window_bounds = array<i64: 1, 8, 16, 16>}]} {
    %c0 = arith.constant 0 : index
    %c0_0 = arith.constant 0 : index
    %c0_1 = arith.constant 0 : index
    %c0_2 = arith.constant 0 : index
    %c0_3 = arith.constant 0 : index
    %0 = vector.load %arg2[%c0, %c0_0, %c0_1, %c0_2, %c0_3] : memref<1x1x10x18x4xf32, #tpu.memory_space<vmem>>, vector<1x1x10x18x4xf32>
    %1 = vector.shape_cast %0 : vector<1x1x10x18x4xf32> to vector<10x18x4xf32>
    %2 = vector.extract_strided_slice %1 {offsets = [0, 0, 0], sizes = [8, 16, 4], strides = [1, 1, 1]} : vector<10x18x4xf32> to vector<8x16x4xf32>
    %3 = vector.shape_cast %2 : vector<8x16x4xf32> to vector<128x4xf32>
    %c0_4 = arith.constant 0 : index
    %c0_5 = arith.constant 0 : index
    %c0_6 = arith.constant 0 : index
    %4 = vector.load %arg3[%c0_4, %c0_5, %c0_6] : memref<9x4x16xf32, #tpu.memory_space<vmem>>, vector<1x4x16xf32>
    %5 = vector.shape_cast %4 : vector<1x4x16xf32> to vector<4x16xf32>
    %cst = arith.constant dense<0.000000e+00> : vector<128x16xf32>
    %6 = tpu.matmul %3, %5, %cst {dimension_numbers = #tpu.dot_dimension_numbers<[1], [0], [0], [1], [0, 0, 1, 1], [], []>} : vector<128x4xf32>, vector<4x16xf32>, vector<128x16xf32> -> vector<128x16xf32>
    %7 = vector.extract_strided_slice %1 {offsets = [0, 1, 0], sizes = [8, 16, 4], strides = [1, 1, 1]} : vector<10x18x4xf32> to vector<8x16x4xf32>
    %8 = vector.shape_cast %7 : vector<8x16x4xf32> to vector<128x4xf32>
    %c1 = arith.constant 1 : index
    %c0_7 = arith.constant 0 : index
    %c0_8 = arith.constant 0 : index
    %9 = vector.load %arg3[%c1, %c0_7, %c0_8] : memref<9x4x16xf32, #tpu.memory_space<vmem>>, vector<1x4x16xf32>
    %10 = vector.shape_cast %9 : vector<1x4x16xf32> to vector<4x16xf32>
    %cst_9 = arith.constant dense<0.000000e+00> : vector<128x16xf32>
    %11 = tpu.matmul %8, %10, %cst_9 {dimension_numbers = #tpu.dot_dimension_numbers<[1], [0], [0], [1], [0, 0, 1, 1], [], []>} : vector<128x4xf32>, vector<4x16xf32>, vector<128x16xf32> -> vector<128x16xf32>
    %12 = arith.addf %6, %11 : vector<128x16xf32>
    %13 = vector.extract_strided_slice %1 {offsets = [0, 2, 0], sizes = [8, 16, 4], strides = [1, 1, 1]} : vector<10x18x4xf32> to vector<8x16x4xf32>
    %14 = vector.shape_cast %13 : vector<8x16x4xf32> to vector<128x4xf32>
    %c2 = arith.constant 2 : index
    %c0_10 = arith.constant 0 : index
    %c0_11 = arith.constant 0 : index
    %15 = vector.load %arg3[%c2, %c0_10, %c0_11] : memref<9x4x16xf32, #tpu.memory_space<vmem>>, vector<1x4x16xf32>
    %16 = vector.shape_cast %15 : vector<1x4x16xf32> to vector<4x16xf32>
    %cst_12 = arith.constant dense<0.000000e+00> : vector<128x16xf32>
    %17 = tpu.matmul %14, %16, %cst_12 {dimension_numbers = #tpu.dot_dimension_numbers<[1], [0], [0], [1], [0, 0, 1, 1], [], []>} : vector<128x4xf32>, vector<4x16xf32>, vector<128x16xf32> -> vector<128x16xf32>
    %18 = arith.addf %12, %17 : vector<128x16xf32>
    %19 = vector.extract_strided_slice %1 {offsets = [1, 0, 0], sizes = [8, 16, 4], strides = [1, 1, 1]} : vector<10x18x4xf32> to vector<8x16x4xf32>
    %20 = vector.shape_cast %19 : vector<8x16x4xf32> to vector<128x4xf32>
    %c3 = arith.constant 3 : index
    %c0_13 = arith.constant 0 : index
    %c0_14 = arith.constant 0 : index
    %21 = vector.load %arg3[%c3, %c0_13, %c0_14] : memref<9x4x16xf32, #tpu.memory_space<vmem>>, vector<1x4x16xf32>
    %22 = vector.shape_cast %21 : vector<1x4x16xf32> to vector<4x16xf32>
    %cst_15 = arith.constant dense<0.000000e+00> : vector<128x16xf32>
    %23 = tpu.matmul %20, %22, %cst_15 {dimension_numbers = #tpu.dot_dimension_numbers<[1], [0], [0], [1], [0, 0, 1, 1], [], []>} : vector<128x4xf32>, vector<4x16xf32>, vector<128x16xf32> -> vector<128x16xf32>
    %24 = arith.addf %18, %23 : vector<128x16xf32>
    %25 = vector.extract_strided_slice %1 {offsets = [1, 1, 0], sizes = [8, 16, 4], strides = [1, 1, 1]} : vector<10x18x4xf32> to vector<8x16x4xf32>
    %26 = vector.shape_cast %25 : vector<8x16x4xf32> to vector<128x4xf32>
    %c4 = arith.constant 4 : index
    %c0_16 = arith.constant 0 : index
    %c0_17 = arith.constant 0 : index
    %27 = vector.load %arg3[%c4, %c0_16, %c0_17] : memref<9x4x16xf32, #tpu.memory_space<vmem>>, vector<1x4x16xf32>
    %28 = vector.shape_cast %27 : vector<1x4x16xf32> to vector<4x16xf32>
    %cst_18 = arith.constant dense<0.000000e+00> : vector<128x16xf32>
    %29 = tpu.matmul %26, %28, %cst_18 {dimension_numbers = #tpu.dot_dimension_numbers<[1], [0], [0], [1], [0, 0, 1, 1], [], []>} : vector<128x4xf32>, vector<4x16xf32>, vector<128x16xf32> -> vector<128x16xf32>
    %30 = arith.addf %24, %29 : vector<128x16xf32>
    %31 = vector.extract_strided_slice %1 {offsets = [1, 2, 0], sizes = [8, 16, 4], strides = [1, 1, 1]} : vector<10x18x4xf32> to vector<8x16x4xf32>
    %32 = vector.shape_cast %31 : vector<8x16x4xf32> to vector<128x4xf32>
    %c5 = arith.constant 5 : index
    %c0_19 = arith.constant 0 : index
    %c0_20 = arith.constant 0 : index
    %33 = vector.load %arg3[%c5, %c0_19, %c0_20] : memref<9x4x16xf32, #tpu.memory_space<vmem>>, vector<1x4x16xf32>
    %34 = vector.shape_cast %33 : vector<1x4x16xf32> to vector<4x16xf32>
    %cst_21 = arith.constant dense<0.000000e+00> : vector<128x16xf32>
    %35 = tpu.matmul %32, %34, %cst_21 {dimension_numbers = #tpu.dot_dimension_numbers<[1], [0], [0], [1], [0, 0, 1, 1], [], []>} : vector<128x4xf32>, vector<4x16xf32>, vector<128x16xf32> -> vector<128x16xf32>
    %36 = arith.addf %30, %35 : vector<128x16xf32>
    %37 = vector.extract_strided_slice %1 {offsets = [2, 0, 0], sizes = [8, 16, 4], strides = [1, 1, 1]} : vector<10x18x4xf32> to vector<8x16x4xf32>
    %38 = vector.shape_cast %37 : vector<8x16x4xf32> to vector<128x4xf32>
    %c6 = arith.constant 6 : index
    %c0_22 = arith.constant 0 : index
    %c0_23 = arith.constant 0 : index
    %39 = vector.load %arg3[%c6, %c0_22, %c0_23] : memref<9x4x16xf32, #tpu.memory_space<vmem>>, vector<1x4x16xf32>
    %40 = vector.shape_cast %39 : vector<1x4x16xf32> to vector<4x16xf32>
    %cst_24 = arith.constant dense<0.000000e+00> : vector<128x16xf32>
    %41 = tpu.matmul %38, %40, %cst_24 {dimension_numbers = #tpu.dot_dimension_numbers<[1], [0], [0], [1], [0, 0, 1, 1], [], []>} : vector<128x4xf32>, vector<4x16xf32>, vector<128x16xf32> -> vector<128x16xf32>
    %42 = arith.addf %36, %41 : vector<128x16xf32>
    %43 = vector.extract_strided_slice %1 {offsets = [2, 1, 0], sizes = [8, 16, 4], strides = [1, 1, 1]} : vector<10x18x4xf32> to vector<8x16x4xf32>
    %44 = vector.shape_cast %43 : vector<8x16x4xf32> to vector<128x4xf32>
    %c7 = arith.constant 7 : index
    %c0_25 = arith.constant 0 : index
    %c0_26 = arith.constant 0 : index
    %45 = vector.load %arg3[%c7, %c0_25, %c0_26] : memref<9x4x16xf32, #tpu.memory_space<vmem>>, vector<1x4x16xf32>
    %46 = vector.shape_cast %45 : vector<1x4x16xf32> to vector<4x16xf32>
    %cst_27 = arith.constant dense<0.000000e+00> : vector<128x16xf32>
    %47 = tpu.matmul %44, %46, %cst_27 {dimension_numbers = #tpu.dot_dimension_numbers<[1], [0], [0], [1], [0, 0, 1, 1], [], []>} : vector<128x4xf32>, vector<4x16xf32>, vector<128x16xf32> -> vector<128x16xf32>
    %48 = arith.addf %42, %47 : vector<128x16xf32>
    %49 = vector.extract_strided_slice %1 {offsets = [2, 2, 0], sizes = [8, 16, 4], strides = [1, 1, 1]} : vector<10x18x4xf32> to vector<8x16x4xf32>
    %50 = vector.shape_cast %49 : vector<8x16x4xf32> to vector<128x4xf32>
    %c8 = arith.constant 8 : index
    %c0_28 = arith.constant 0 : index
    %c0_29 = arith.constant 0 : index
    %51 = vector.load %arg3[%c8, %c0_28, %c0_29] : memref<9x4x16xf32, #tpu.memory_space<vmem>>, vector<1x4x16xf32>
    %52 = vector.shape_cast %51 : vector<1x4x16xf32> to vector<4x16xf32>
    %cst_30 = arith.constant dense<0.000000e+00> : vector<128x16xf32>
    %53 = tpu.matmul %50, %52, %cst_30 {dimension_numbers = #tpu.dot_dimension_numbers<[1], [0], [0], [1], [0, 0, 1, 1], [], []>} : vector<128x4xf32>, vector<4x16xf32>, vector<128x16xf32> -> vector<128x16xf32>
    %54 = arith.addf %48, %53 : vector<128x16xf32>
    %c0_31 = arith.constant 0 : index
    %c0_32 = arith.constant 0 : index
    %55 = vector.load %arg4[%c0_31, %c0_32] : memref<1x16xf32, #tpu.memory_space<vmem>>, vector<1x16xf32>
    %56 = vector.shape_cast %55 : vector<1x16xf32> to vector<16xf32>
    %57 = vector.shape_cast %56 : vector<16xf32> to vector<1x16xf32>
    %58 = vector.broadcast %57 : vector<1x16xf32> to vector<128x16xf32>
    %59 = arith.addf %54, %58 : vector<128x16xf32>
    %cst_33 = arith.constant 0.000000e+00 : f32
    %60 = vector.broadcast %cst_33 : f32 to vector<128x16xf32>
    %61 = arith.maximumf %59, %60 : vector<128x16xf32>
    %62 = vector.shape_cast %61 : vector<128x16xf32> to vector<1x8x16x16xf32>
    %c0_34 = arith.constant 0 : index
    %c0_35 = arith.constant 0 : index
    %c0_36 = arith.constant 0 : index
    %c0_37 = arith.constant 0 : index
    %63 = vector.load %arg5[%c0_34, %c0_35, %c0_36, %c0_37] : memref<1x8x16x16xf32, #tpu.memory_space<vmem>>, vector<1x8x16x16xf32>
    tpu.vector_store %arg5[%c0_34, %c0_35, %c0_36, %c0_37], %62 {strides = array<i32>} : memref<1x8x16x16xf32, #tpu.memory_space<vmem>>, vector<1x8x16x16xf32>,
    return
  }
  func.func @transform_0(%arg0: i32, %arg1: i32) -> (i32, i32, i32, i32, i32) {
    %c0_i32 = arith.constant 0 : i32
    %c0_i32_0 = arith.constant 0 : i32
    %c0_i32_1 = arith.constant 0 : i32
    %c0_i32_2 = arith.constant 0 : i32
    return %arg0, %arg1, %c0_i32, %c0_i32_0, %c0_i32_1 : i32, i32, i32, i32, i32
  }
  func.func @transform_1(%arg0: i32, %arg1: i32) -> (i32, i32, i32) {
    %c0_i32 = arith.constant 0 : i32
    %c0_i32_0 = arith.constant 0 : i32
    %c0_i32_1 = arith.constant 0 : i32
    %c0_i32_2 = arith.constant 0 : i32
    return %c0_i32, %c0_i32_0, %c0_i32_1 : i32, i32, i32
  }
  func.func @transform_2(%arg0: i32, %arg1: i32) -> (i32, i32) {
    %c0_i32 = arith.constant 0 : i32
    %c0_i32_0 = arith.constant 0 : i32
    %c0_i32_1 = arith.constant 0 : i32
    return %c0_i32, %c0_i32_0 : i32, i32
  }
  func.func @transform_3(%arg0: i32, %arg1: i32) -> (i32, i32, i32, i32) {
    %c0_i32 = arith.constant 0 : i32
    %c0_i32_0 = arith.constant 0 : i32
    %c0_i32_1 = arith.constant 0 : i32
    return %arg0, %arg1, %c0_i32, %c0_i32_0 : i32, i32, i32, i32
  }
}

</mosaic_0001>

<llo_original>
// kernel: tpu_custom_call.1
$region0: #{tpu_custom_call.1}
  #allocation0 [shape = 'u32[]', space=smem, size = 0x4, offset = 0x4, fixed_abs, tag = 'smem constant byte address 0x4 - core index']
  #allocation1 [shape = 'u32[144,128]{1,0:T(1,128)}', space=vmem, size = 0x12000, scoped, tag = 'internal scratch']
  %s0 = inlined_call_operand.vmem [shape: f32[2,2,10,18,4], index: 0, kind: input, shape index: {}]
  %s1 = inlined_call_operand.vmem [shape: f32[9,4,16], index: 1, kind: input, shape index: {}]
  %s2 = inlined_call_operand.vmem [shape: f32[1,16], index: 2, kind: input, shape index: {}]
  %s3 = inlined_call_operand.hbm [shape: f32[2,16,16,16], index: 3, kind: output, shape index: {}]
  %s4 = sld [smem:[#allocation0]]
  $region45: #{tpu_custom_call.1} parent=0
    _
  %s6 = ssub.s32 1, %s4
  %s7 = scalar_select 0, %s6, %s4
  $region1: #{tpu_custom_call.1} parent=0
    #allocation2 [shape = 'u8[131072]{0}', space=vmem, size = 0x20000, scoped, tag = 'output window, operand 0']
    #allocation3 [shape = 's32[2]{0}', space=sflag, size = 0x8, scoped, tag = 'scoped memory for tpu_custom_call.1']
    %8 = vsyncpa [#allocation3], 0
    %s9 = scalar_lea.sflag [#allocation3], 1
    %10 = vsyncpa %s9, 0
    loop: start=0, step=1, limit=6
    $region2: #{tpu_custom_call.1} parent=1 // loop_pre_header
      _
    $region3: #{tpu_custom_call.1} parent=1 // loop_header
      %s12 = sphi 0, %s16
      %p13 = scmp.ge.s32.totalorder %s12, 6
      %s19 = sphi 0, %s31
      %s20 = sphi 0, %s27
      %s21 = sphi 0, %s19
      %s22 = sphi 0, %s20
      %s23 = sphi 0, %s21
      %s24 = sphi 0, %s22
      %s36 = sphi 0, %s38
      %s39 = sphi 0, %s36
      %s40 = sphi 0, %s39
      %s56 = sphi 0, %s40
      %s60 = sphi 0, %s60
      %s62 = sphi 0, %s60
      %s63 = sphi 0, %s62
      %s77 = sphi 0, %s63
      %s81 = sphi 0, %s81
      %s83 = sphi 0, %s81
      %s84 = sphi 0, %s83
      %s98 = sphi 0, %s84
      %s106 = sphi 0, %s108
      %s109 = sphi 0, %s106
      %s110 = sphi 0, %s109
      %s126 = sphi 0, %s110
    $region4: #{tpu_custom_call.1} parent=1 // loop_header_branch
      %15 = sbr.rel (%p13) target = $region8
    $region5: #{tpu_custom_call.1} parent=1 // loop_body
      %s17 = ssub.s32 %s12, 1
      %s18 = ssub.s32 %s12, 2
      %s25 = sadd.s32 1, %s20
      %p26 = scmp.ge.s32.totalorder %s25, 2
      %s27 = scalar_select %p26, 0, %s25
      %s28 = sadd.s32 1, %s19
      %s29 = scalar_select %p26, %s28, %s19
      %p30 = scmp.ge.s32.totalorder %s29, 2
      %s31 = scalar_select %p30, 0, %s29
      %s32 = ssub.s32 %s19, %s31
      %s33 = ssub.s32 %s20, %s27
      %s34 = sor.u32 %s32, %s33
      %p35 = scmp.eq.s32.totalorder %s34, 0
      %s37 = sadd.s32 %s36, 1
      %s38 = scalar_select %p35, %s36, %s37
      %p41 = pneg %p35
      %p42 = scmp.eq.s32.totalorder %s12, 3
      %p43 = por %p41, %p42
      %p44 = scmp.ne.s32.totalorder %s36, %s39
      %p45 = scmp.eq.s32.totalorder %s12, 0
      %p46 = por %p44, %p45
      %p47 = scmp.ne.s32.totalorder %s36, %s39
      %p48 = scmp.eq.s32.totalorder %s17, 3
      %p49 = por %p47, %p48
      %p50 = scmp.ne.s32.totalorder %s39, %s40
      %p51 = scmp.eq.s32.totalorder %s17, 0
      %p52 = por %p50, %p51
      %p53 = scmp.ne.s32.totalorder %s39, %s40
      %p54 = scmp.eq.s32.totalorder %s18, 3
      %p55 = por %p53, %p54
      %p57 = scmp.ne.s32.totalorder %s40, %s56
      %p58 = scmp.eq.s32.totalorder %s18, 0
      %p59 = por %p57, %p58
      %s61 = sadd.s32 %s60, 1
      %p64 = scmp.eq.s32.totalorder %s12, 3
      %p65 = scmp.ne.s32.totalorder %s60, %s62
      %p66 = scmp.eq.s32.totalorder %s12, 0
      %p67 = por %p65, %p66
      %p68 = scmp.ne.s32.totalorder %s60, %s62
      %p69 = scmp.eq.s32.totalorder %s17, 3
      %p70 = por %p68, %p69
      %p71 = scmp.ne.s32.totalorder %s62, %s63
      %p72 = scmp.eq.s32.totalorder %s17, 0
      %p73 = por %p71, %p72
      %p74 = scmp.ne.s32.totalorder %s62, %s63
      %p75 = scmp.eq.s32.totalorder %s18, 3
      %p76 = por %p74, %p75
      %p78 = scmp.ne.s32.totalorder %s63, %s77
      %p79 = scmp.eq.s32.totalorder %s18, 0
      %p80 = por %p78, %p79
      %s82 = sadd.s32 %s81, 1
      %p85 = scmp.eq.s32.totalorder %s12, 3
      %p86 = scmp.ne.s32.totalorder %s81, %s83
      %p87 = scmp.eq.s32.totalorder %s12, 0
      %p88 = por %p86, %p87
      %p89 = scmp.ne.s32.totalorder %s81, %s83
      %p90 = scmp.eq.s32.totalorder %s17, 3
      %p91 = por %p89, %p90
      %p92 = scmp.ne.s32.totalorder %s83, %s84
      %p93 = scmp.eq.s32.totalorder %s17, 0
      %p94 = por %p92, %p93
      %p95 = scmp.ne.s32.totalorder %s83, %s84
      %p96 = scmp.eq.s32.totalorder %s18, 3
      %p97 = por %p95, %p96
      %p99 = scmp.ne.s32.totalorder %s84, %s98
      %p100 = scmp.eq.s32.totalorder %s18, 0
      %p101 = por %p99, %p100
      %s102 = ssub.s32 %s19, %s31
      %s103 = ssub.s32 %s20, %s27
      %s104 = sor.u32 %s102, %s103
      %p105 = scmp.eq.s32.totalorder %s104, 0
      %s107 = sadd.s32 %s106, 1
      %s108 = scalar_select %p105, %s106, %s107
      %p111 = pneg %p105
      %p112 = scmp.eq.s32.totalorder %s12, 3
      %p113 = por %p111, %p112
      %p114 = scmp.ne.s32.totalorder %s106, %s109
      %p115 = scmp.eq.s32.totalorder %s12, 0
      %p116 = por %p114, %p115
      %p117 = scmp.ne.s32.totalorder %s106, %s109
      %p118 = scmp.eq.s32.totalorder %s17, 3
      %p119 = por %p117, %p118
      %p120 = scmp.ne.s32.totalorder %s109, %s110
      %p121 = scmp.eq.s32.totalorder %s17, 0
      %p122 = por %p120, %p121
      %p123 = scmp.ne.s32.totalorder %s109, %s110
      %p124 = scmp.eq.s32.totalorder %s18, 3
      %p125 = por %p123, %p124
      %p127 = scmp.ne.s32.totalorder %s110, %s126
      %p128 = scmp.eq.s32.totalorder %s18, 0
      %p129 = por %p127, %p128
      %p130 = scmp.le.s32.totalorder 1, %s12
      %p131 = scmp.lt.s32.totalorder %s12, 5
      %p132 = pnand %p130, %p131
      %p133 = pneg %p132
      // Predicated region
      $region9: #{tpu_custom_call.1} parent=5 // pred_check
        _
      $region10: #{tpu_custom_call.1} parent=5 // pred_check_branch
        %135 = sbr.rel (%p132) target = $region12
      $region11: #{tpu_custom_call.1} parent=5 // pred_region
        %s136 = ssub.s32 %s12, 1
        // Predicated region
        $region13: #{tpu_custom_call.1} parent=11 // pred_check
          %p137 = pneg %p73
        $region14: #{tpu_custom_call.1} parent=11 // pred_check_branch
          %139 = sbr.rel (%p137) target = $region16
        $region15: #{tpu_custom_call.1} parent=11 // pred_region
          _
        $region16: #{tpu_custom_call.1} parent=11 // pred_fallthru
          _
        // Predicated region
        $region17: #{tpu_custom_call.1} parent=11 // pred_check
          %p140 = pneg %p94
        $region18: #{tpu_custom_call.1} parent=11 // pred_check_branch
          %142 = sbr.rel (%p140) target = $region20
        $region19: #{tpu_custom_call.1} parent=11 // pred_region
          _
        $region20: #{tpu_custom_call.1} parent=11 // pred_fallthru
          _
      $region12: #{tpu_custom_call.1} parent=5 // pred_fallthru
        _
      %p143 = scmp.lt.s32.totalorder %s12, 4
      // Predicated region
      $region21: #{tpu_custom_call.1} parent=5 // pred_check
        %p144 = pneg %p143
      $region22: #{tpu_custom_call.1} parent=5 // pred_check_branch
        %146 = sbr.rel (%p144) target = $region24
      $region23: #{tpu_custom_call.1} parent=5 // pred_region
        // Predicated region
        $region25: #{tpu_custom_call.1} parent=23 // pred_check
          %p147 = pneg %p46
        $region26: #{tpu_custom_call.1} parent=23 // pred_check_branch
          %149 = sbr.rel (%p147) target = $region28
        $region27: #{tpu_custom_call.1} parent=23 // pred_region
          %p150 = scmp.lt.s32.totalorder %s19, 1
          %s151 = scalar_select %p150, %s19, 1
          %p152 = scmp.lt.s32.totalorder %s20, 1
          %s153 = scalar_select %p152, %s20, 1
          %s154 = smul.addr %s153, 30
          %s155 = smul.addr %s151, 60
          %s156 = sadd.s32 %s154, %s155
          %s157 = smul.addr %s156, 8
          %s158 = scalar_lea.vmem %s0, %s157
        $region28: #{tpu_custom_call.1} parent=23 // pred_fallthru
          _
      $region24: #{tpu_custom_call.1} parent=5 // pred_fallthru
        _
      %p159 = scmp.le.s32.totalorder 1, %s12
      %p160 = scmp.lt.s32.totalorder %s12, 5
      %p161 = pnand %p159, %p160
      %p162 = pneg %p161
      // Predicated region
      $region29: #{tpu_custom_call.1} parent=5 // pred_check
        _
      $region30: #{tpu_custom_call.1} parent=5 // pred_check_branch
        %164 = sbr.rel (%p161) target = $region32
      $region31: #{tpu_custom_call.1} parent=5 // pred_region
        %s165 = ssub.s32 %s12, 1
        %p166 = scmp.lt.s32.totalorder %s21, 1
        %s167 = scalar_select %p166, %s21, 1
        %p168 = scmp.lt.s32.totalorder %s22, 1
        %s169 = scalar_select %p168, %s22, 1
        %s170 = smul.addr %s169, 30
        %s171 = smul.addr %s167, 60
        %s172 = sadd.s32 %s170, %s171
        %s173 = smul.addr %s172, 8
        %s174 = scalar_lea.vmem %s0, %s173
        %p175 = pneg %p52
        %p176 = pneg %p49
        %p177 = pneg %p73
        %p178 = pneg %p70
        %p179 = pneg %p94
        %p180 = pneg %p91
        %p181 = pneg %p122
        %p182 = pneg %p119
        %s183 = sand.u32 %s109, 1
        %s184 = scalar_lea.sflag [#allocation3], %s183
        %s185 = sand.u32 %s109, 1
        %s186 = smul.addr %s185, 128
        %s187 = scalar_lea.vmem [#allocation2], %s186
        %p188 = scmp.lt.s32.totalorder %s21, 1
        %s189 = scalar_select %p188, %s21, 1
        %p190 = scmp.lt.s32.totalorder %s22, 1
        %s191 = scalar_select %p190, %s22, 1
        %s192 = smul.addr %s191, 30
        %s193 = smul.addr %s189, 60
        %s194 = sadd.s32 %s192, %s193
        %s195 = smul.addr %s194, 8
        %s196 = scalar_lea.vmem %s0, %s195
        %s197 = smul.u32 8, %s22
        %v198 = vld [vmem:[%s196] sm:$0xff]
        %v199 = vld [vmem:[%s196 + $0x8] sm:$0xff]
        %v200 = vld [vmem:[%s196 + $0x10] sm:$0x3]
        %v201 = vld [vmem:[%s196 + $0x18] sm:$0xff]
        %v202 = vld [vmem:[%s196 + $0x20] sm:$0xff]
        %v203 = vld [vmem:[%s196 + $0x28] sm:$0x3]
        %v204 = vld [vmem:[%s196 + $0x30] sm:$0xff]
        %v205 = vld [vmem:[%s196 + $0x38] sm:$0xff]
        %v206 = vld [vmem:[%s196 + $0x40] sm:$0x3]
        %v207 = vld [vmem:[%s196 + $0x48] sm:$0xff]
        %v208 = vld [vmem:[%s196 + $0x50] sm:$0xff]
        %v209 = vld [vmem:[%s196 + $0x58] sm:$0x3]
        %v210 = vld [vmem:[%s196 + $0x60] sm:$0xff]
        %v211 = vld [vmem:[%s196 + $0x68] sm:$0xff]
        %v212 = vld [vmem:[%s196 + $0x70] sm:$0x3]
        %v213 = vld [vmem:[%s196 + $0x78] sm:$0xff]
        %v214 = vld [vmem:[%s196 + $0x80] sm:$0xff]
        %v215 = vld [vmem:[%s196 + $0x88] sm:$0x3]
        %v216 = vld [vmem:[%s196 + $0x90] sm:$0xff]
        %v217 = vld [vmem:[%s196 + $0x98] sm:$0xff]
        %v218 = vld [vmem:[%s196 + $0xa0] sm:$0x3]
        %v219 = vld [vmem:[%s196 + $0xa8] sm:$0xff]
        %v220 = vld [vmem:[%s196 + $0xb0] sm:$0xff]
        %v221 = vld [vmem:[%s196 + $0xb8] sm:$0x3]
        %v222 = vld [vmem:[%s196 + $0xc0] sm:$0xff]
        %v223 = vld [vmem:[%s196 + $0xc8] sm:$0xff]
        %v224 = vld [vmem:[%s196 + $0xd0] sm:$0x3]
        %v225 = vld [vmem:[%s196 + $0xd8] sm:$0xff]
        %v226 = vld [vmem:[%s196 + $0xe0] sm:$0xff]
        %v227 = vld [vmem:[%s196 + $0xe8] sm:$0x3]
        %v228 = vld [vmem:[%s1] sm:$0xf]
        %vm253 = vcmask 1046528
        %v254 = vrot.slane %v198, 1
        %v255 = vrot.slane %v199, 1
        %v256 = vsel %vm253, %v254, %v255
        %v257 = vrot.slane %v200, 1
        %v258 = vsel %vm253, %v255, %v257
        %v259 = vrot.slane %v201, 1
        %v260 = vrot.slane %v202, 1
        %v261 = vsel %vm253, %v259, %v260
        %v262 = vrot.slane %v203, 1
        %v263 = vsel %vm253, %v260, %v262
        %v264 = vrot.slane %v204, 1
        %v265 = vrot.slane %v205, 1
        %v266 = vsel %vm253, %v264, %v265
        %v267 = vrot.slane %v206, 1
        %v268 = vsel %vm253, %v265, %v267
        %v269 = vrot.slane %v207, 1
        %v270 = vrot.slane %v208, 1
        %v271 = vsel %vm253, %v269, %v270
        %v272 = vrot.slane %v209, 1
        %v273 = vsel %vm253, %v270, %v272
        %v274 = vrot.slane %v210, 1
        %v275 = vrot.slane %v211, 1
        %v276 = vsel %vm253, %v274, %v275
        %v277 = vrot.slane %v212, 1
        %v278 = vsel %vm253, %v275, %v277
        %v279 = vrot.slane %v213, 1
        %v280 = vrot.slane %v214, 1
        %v281 = vsel %vm253, %v279, %v280
        %v282 = vrot.slane %v215, 1
        %v283 = vsel %vm253, %v280, %v282
        %v284 = vrot.slane %v216, 1
        %v285 = vrot.slane %v217, 1
        %v286 = vsel %vm253, %v284, %v285
        %v287 = vrot.slane %v218, 1
        %v288 = vsel %vm253, %v285, %v287
        %v289 = vrot.slane %v219, 1
        %v290 = vrot.slane %v220, 1
        %v291 = vsel %vm253, %v289, %v290
        %v292 = vrot.slane %v221, 1
        %v293 = vsel %vm253, %v290, %v292
        %s294 = scalar_lea.vmem %s1, 4
        %v295 = vld [vmem:[%s294] sm:$0xf]
        %vm296 = vcmask 31744
        %v297 = vsel %vm296, %v256, 0
        %v299 = vsel %vm296, %v258, 0
        %v301 = vsel %vm296, %v261, 0
        %v303 = vsel %vm296, %v263, 0
        %v305 = vsel %vm296, %v266, 0
        %v307 = vsel %vm296, %v268, 0
        %v309 = vsel %vm296, %v271, 0
        %v311 = vsel %vm296, %v273, 0
        %v313 = vsel %vm296, %v276, 0
        %v315 = vsel %vm296, %v278, 0
        %v317 = vsel %vm296, %v281, 0
        %v319 = vsel %vm296, %v283, 0
        %v321 = vsel %vm296, %v286, 0
        %v323 = vsel %vm296, %v288, 0
        %v325 = vsel %vm296, %v291, 0
        %v327 = vsel %vm296, %v293, 0
        %vm329 = vcmask 1043456
        %v331 = vsel %vm329, %v295, 0
        %333 = vmatprep.subr.mxu0 0.0
        %334 = vmatpush1.msra.mxu0 0.0
        %335 = vmatprep.subr.mxu0 0.0
        %336 = vmatpush1.msra.mxu0 0.0
        %337 = vmatprep.subr.mxu0 0.0
        %338 = vmatpush1.msra.mxu0 0.0
        %339 = vmatprep.subr.mxu0 0.0
        %340 = vmatpush1.msra.mxu0 0.0
        %341 = vmatprep.subr.mxu0 0.0
        %342 = vmatpush1.msra.mxu0 0.0
        %343 = vmatprep.subr.mxu0 0.0
        %344 = vmatpush1.msra.mxu0 0.0
        %345 = vmatprep.subr.mxu0 0.0
        %346 = vmatpush1.msra.mxu0 0.0
        %347 = vmatprep.subr.mxu0 0.0
        %348 = vmatpush1.msra.mxu0 0.0
        %349 = vmatprep.subr.mxu0 0.0
        %350 = vmatpush1.msra.mxu0 0.0
        %351 = vmatprep.subr.mxu0 0.0
        %352 = vmatpush1.msra.mxu0 0.0
        %353 = vmatprep.subr.mxu0 0.0
        %354 = vmatpush1.msra.mxu0 0.0
        %355 = vmatprep.subr.mxu0 0.0
        %356 = vmatpush1.msra.mxu0 0.0
        %357 = vmatprep.subr.mxu0 0.0
        %358 = vmatpush1.msra.mxu0 0.0
        %359 = vmatprep.subr.mxu0 0.0
        %360 = vmatpush1.msra.mxu0 0.0
        %361 = vmatprep.subr.mxu0 0.0
        %362 = vmatpush1.msra.mxu0 0.0
        %363 = vmatprep.subr.mxu0 0.0
        %364 = vmatpush1.msra.mxu0 %v331
        %365 = vmatprep.subr.mxu0 0.0
        %366 = vmatpush2.msra.mxu0 0.0
        %367 = vmatprep.subr.mxu0 0.0
        %368 = vmatpush2.msra.mxu0 0.0
        %369 = vmatprep.subr.mxu0 0.0
        %370 = vmatpush2.msra.mxu0 0.0
        %371 = vmatprep.subr.mxu0 0.0
        %372 = vmatpush2.msra.mxu0 0.0
        %373 = vmatprep.subr.mxu0 0.0
        %374 = vmatpush2.msra.mxu0 0.0
        %375 = vmatprep.subr.mxu0 0.0
        %376 = vmatpush2.msra.mxu0 0.0
        %377 = vmatprep.subr.mxu0 0.0
        %378 = vmatpush2.msra.mxu0 0.0
        %379 = vmatprep.subr.mxu0 0.0
        %380 = vmatpush2.msra.mxu0 0.0
        %381 = vmatprep.subr.mxu0 0.0
        %382 = vmatpush2.msra.mxu0 0.0
        %383 = vmatprep.subr.mxu0 0.0
        %384 = vmatpush2.msra.mxu0 0.0
        %385 = vmatprep.subr.mxu0 0.0
        %386 = vmatpush2.msra.mxu0 0.0
        %387 = vmatprep.subr.mxu0 0.0
        %388 = vmatpush2.msra.mxu0 0.0
        %389 = vmatprep.subr.mxu0 0.0
        %390 = vmatpush2.msra.mxu0 0.0
        %391 = vmatprep.subr.mxu0 0.0
        %392 = vmatpush2.msra.mxu0 0.0
        %393 = vmatprep.subr.mxu0 0.0
        %394 = vmatpush2.msra.mxu0 0.0
        %395 = vmatprep.subr.mxu0 0.0
        %396 = vmatpush2.msra.mxu0 0.0
        %397 = vmatprep.mubr.f32.mxu0 0.0
        %398 = vmatmul.mubr.f32.gmra.mxu0 %v297
        %v399 = vpop.f32.mrf.mxu0
        %v400 = vadd.f32 0.0, %v399
        %v401 = vpop.f32.mrf.mxu0
        %402 = vmatprep.mubr.f32.mxu0 0.0
        %403 = vmatmul.mubr.f32.gmra.mxu0 %v299
        %v404 = vpop.f32.mrf.mxu0
        %v405 = vadd.f32 0.0, %v404
        %v406 = vpop.f32.mrf.mxu0
        %407 = vmatprep.mubr.f32.mxu0 0.0
        %408 = vmatmul.mubr.f32.gmra.mxu0 %v301
        %v409 = vpop.f32.mrf.mxu0
        %v410 = vadd.f32 0.0, %v409
        %v411 = vpop.f32.mrf.mxu0
        %412 = vmatprep.mubr.f32.mxu0 0.0
        %413 = vmatmul.mubr.f32.gmra.mxu0 %v303
        %v414 = vpop.f32.mrf.mxu0
        %v415 = vadd.f32 0.0, %v414
        %v416 = vpop.f32.mrf.mxu0
        %417 = vmatprep.mubr.f32.mxu0 0.0
        %418 = vmatmul.mubr.f32.gmra.mxu0 %v305
        %v419 = vpop.f32.mrf.mxu0
        %v420 = vadd.f32 0.0, %v419
        %v421 = vpop.f32.mrf.mxu0
        %422 = vmatprep.mubr.f32.mxu0 0.0
        %423 = vmatmul.mubr.f32.gmra.mxu0 %v307
        %v424 = vpop.f32.mrf.mxu0
        %v425 = vadd.f32 0.0, %v424
        %v426 = vpop.f32.mrf.mxu0
        %427 = vmatprep.mubr.f32.mxu0 0.0
        %428 = vmatmul.mubr.f32.gmra.mxu0 %v309
        %v429 = vpop.f32.mrf.mxu0
        %v430 = vadd.f32 0.0, %v429
        %v431 = vpop.f32.mrf.mxu0
        %432 = vmatprep.mubr.f32.mxu0 0.0
        %433 = vmatmul.mubr.f32.gmra.mxu0 %v311
        %v434 = vpop.f32.mrf.mxu0
        %v435 = vadd.f32 0.0, %v434
        %v436 = vpop.f32.mrf.mxu0
        %437 = vmatprep.mubr.f32.mxu0 0.0
        %438 = vmatmul.mubr.f32.gmra.mxu0 %v313
        %v439 = vpop.f32.mrf.mxu0
        %v440 = vadd.f32 0.0, %v439
        %v441 = vpop.f32.mrf.mxu0
        %442 = vmatprep.mubr.f32.mxu0 0.0
        %443 = vmatmul.mubr.f32.gmra.mxu0 %v315
        %v444 = vpop.f32.mrf.mxu0
        %v445 = vadd.f32 0.0, %v444
        %v446 = vpop.f32.mrf.mxu0
        %447 = vmatprep.mubr.f32.mxu0 0.0
        %448 = vmatmul.mubr.f32.gmra.mxu0 %v317
        %v449 = vpop.f32.mrf.mxu0
        %v450 = vadd.f32 0.0, %v449
        %v451 = vpop.f32.mrf.mxu0
        %452 = vmatprep.mubr.f32.mxu0 0.0
        %453 = vmatmul.mubr.f32.gmra.mxu0 %v319
        %v454 = vpop.f32.mrf.mxu0
        %v455 = vadd.f32 0.0, %v454
        %v456 = vpop.f32.mrf.mxu0
        %457 = vmatprep.mubr.f32.mxu0 0.0
        %458 = vmatmul.mubr.f32.gmra.mxu0 %v321
        %v459 = vpop.f32.mrf.mxu0
        %v460 = vadd.f32 0.0, %v459
        %v461 = vpop.f32.mrf.mxu0
        %462 = vmatprep.mubr.f32.mxu0 0.0
        %463 = vmatmul.mubr.f32.gmra.mxu0 %v323
        %v464 = vpop.f32.mrf.mxu0
        %v465 = vadd.f32 0.0, %v464
        %v466 = vpop.f32.mrf.mxu0
        %467 = vmatprep.mubr.f32.mxu0 0.0
        %468 = vmatmul.mubr.f32.gmra.mxu0 %v325
        %v469 = vpop.f32.mrf.mxu0
        %v470 = vadd.f32 0.0, %v469
        %v471 = vpop.f32.mrf.mxu0
        %472 = vmatprep.mubr.f32.mxu0 0.0
        %473 = vmatmul.mubr.f32.gmra.mxu0 %v327
        %v474 = vpop.f32.mrf.mxu0
        %v475 = vadd.f32 0.0, %v474
        %v476 = vpop.f32.mrf.mxu0
        %477 = vdwg.mxu0
        %v478 = vsel %vm296, %v198, 0
        %v480 = vsel %vm296, %v199, 0
        %v482 = vsel %vm296, %v201, 0
        %v484 = vsel %vm296, %v202, 0
        %v486 = vsel %vm296, %v204, 0
        %v488 = vsel %vm296, %v205, 0
        %v490 = vsel %vm296, %v207, 0
        %v492 = vsel %vm296, %v208, 0
        %v494 = vsel %vm296, %v210, 0
        %v496 = vsel %vm296, %v211, 0
        %v498 = vsel %vm296, %v213, 0
        %v500 = vsel %vm296, %v214, 0
        %v502 = vsel %vm296, %v216, 0
        %v504 = vsel %vm296, %v217, 0
        %v506 = vsel %vm296, %v219, 0
        %v508 = vsel %vm296, %v220, 0
        %v511 = vsel %vm329, %v228, 0
        %513 = vmatprep.subr.mxu0 0.0
        %514 = vmatpush1.msra.mxu0 0.0
        %515 = vmatprep.subr.mxu0 0.0
        %516 = vmatpush1.msra.mxu0 0.0
        %517 = vmatprep.subr.mxu0 0.0
        %518 = vmatpush1.msra.mxu0 0.0
        %519 = vmatprep.subr.mxu0 0.0
        %520 = vmatpush1.msra.mxu0 0.0
        %521 = vmatprep.subr.mxu0 0.0
        %522 = vmatpush1.msra.mxu0 0.0
        %523 = vmatprep.subr.mxu0 0.0
        %524 = vmatpush1.msra.mxu0 0.0
        %525 = vmatprep.subr.mxu0 0.0
        %526 = vmatpush1.msra.mxu0 0.0
        %527 = vmatprep.subr.mxu0 0.0
        %528 = vmatpush1.msra.mxu0 0.0
        %529 = vmatprep.subr.mxu0 0.0
        %530 = vmatpush1.msra.mxu0 0.0
        %531 = vmatprep.subr.mxu0 0.0
        %532 = vmatpush1.msra.mxu0 0.0
        %533 = vmatprep.subr.mxu0 0.0
        %534 = vmatpush1.msra.mxu0 0.0
        %535 = vmatprep.subr.mxu0 0.0
        %536 = vmatpush1.msra.mxu0 0.0
        %537 = vmatprep.subr.mxu0 0.0
        %538 = vmatpush1.msra.mxu0 0.0
        %539 = vmatprep.subr.mxu0 0.0
        %540 = vmatpush1.msra.mxu0 0.0
        %541 = vmatprep.subr.mxu0 0.0
        %542 = vmatpush1.msra.mxu0 0.0
        %543 = vmatprep.subr.mxu0 0.0
        %544 = vmatpush1.msra.mxu0 %v511
        %545 = vmatprep.subr.mxu0 0.0
        %546 = vmatpush2.msra.mxu0 0.0
        %547 = vmatprep.subr.mxu0 0.0
        %548 = vmatpush2.msra.mxu0 0.0
        %549 = vmatprep.subr.mxu0 0.0
        %550 = vmatpush2.msra.mxu0 0.0
        %551 = vmatprep.subr.mxu0 0.0
        %552 = vmatpush2.msra.mxu0 0.0
        %553 = vmatprep.subr.mxu0 0.0
        %554 = vmatpush2.msra.mxu0 0.0
        %555 = vmatprep.subr.mxu0 0.0
        %556 = vmatpush2.msra.mxu0 0.0
        %557 = vmatprep.subr.mxu0 0.0
        %558 = vmatpush2.msra.mxu0 0.0
        %559 = vmatprep.subr.mxu0 0.0
        %560 = vmatpush2.msra.mxu0 0.0
        %561 = vmatprep.subr.mxu0 0.0
        %562 = vmatpush2.msra.mxu0 0.0
        %563 = vmatprep.subr.mxu0 0.0
        %564 = vmatpush2.msra.mxu0 0.0
        %565 = vmatprep.subr.mxu0 0.0
        %566 = vmatpush2.msra.mxu0 0.0
        %567 = vmatprep.subr.mxu0 0.0
        %568 = vmatpush2.msra.mxu0 0.0
        %569 = vmatprep.subr.mxu0 0.0
        %570 = vmatpush2.msra.mxu0 0.0
        %571 = vmatprep.subr.mxu0 0.0
        %572 = vmatpush2.msra.mxu0 0.0
        %573 = vmatprep.subr.mxu0 0.0
        %574 = vmatpush2.msra.mxu0 0.0
        %575 = vmatprep.subr.mxu0 0.0
        %576 = vmatpush2.msra.mxu0 0.0
        %577 = vmatprep.mubr.f32.mxu0 0.0
        %578 = vmatmul.mubr.f32.gmra.mxu0 %v478
        %v579 = vpop.f32.mrf.mxu0
        %v580 = vadd.f32 %v400, %v579
        %v581 = vpop.f32.mrf.mxu0
        %582 = vmatprep.mubr.f32.mxu0 0.0
        %583 = vmatmul.mubr.f32.gmra.mxu0 %v480
        %v584 = vpop.f32.mrf.mxu0
        %v585 = vadd.f32 %v405, %v584
        %v586 = vpop.f32.mrf.mxu0
        %587 = vmatprep.mubr.f32.mxu0 0.0
        %588 = vmatmul.mubr.f32.gmra.mxu0 %v482
        %v589 = vpop.f32.mrf.mxu0
        %v590 = vadd.f32 %v410, %v589
        %v591 = vpop.f32.mrf.mxu0
        %592 = vmatprep.mubr.f32.mxu0 0.0
        %593 = vmatmul.mubr.f32.gmra.mxu0 %v484
        %v594 = vpop.f32.mrf.mxu0
        %v595 = vadd.f32 %v415, %v594
        %v596 = vpop.f32.mrf.mxu0
        %597 = vmatprep.mubr.f32.mxu0 0.0
        %598 = vmatmul.mubr.f32.gmra.mxu0 %v486
        %v599 = vpop.f32.mrf.mxu0
        %v600 = vadd.f32 %v420, %v599
        %v601 = vpop.f32.mrf.mxu0
        %602 = vmatprep.mubr.f32.mxu0 0.0
        %603 = vmatmul.mubr.f32.gmra.mxu0 %v488
        %v604 = vpop.f32.mrf.mxu0
        %v605 = vadd.f32 %v425, %v604
        %v606 = vpop.f32.mrf.mxu0
        %607 = vmatprep.mubr.f32.mxu0 0.0
        %608 = vmatmul.mubr.f32.gmra.mxu0 %v490
        %v609 = vpop.f32.mrf.mxu0
        %v610 = vadd.f32 %v430, %v609
        %v611 = vpop.f32.mrf.mxu0
        %612 = vmatprep.mubr.f32.mxu0 0.0
        %613 = vmatmul.mubr.f32.gmra.mxu0 %v492
        %v614 = vpop.f32.mrf.mxu0
        %v615 = vadd.f32 %v435, %v614
        %v616 = vpop.f32.mrf.mxu0
        %617 = vmatprep.mubr.f32.mxu0 0.0
        %618 = vmatmul.mubr.f32.gmra.mxu0 %v494
        %v619 = vpop.f32.mrf.mxu0
        %v620 = vadd.f32 %v440, %v619
        %v621 = vpop.f32.mrf.mxu0
        %622 = vmatprep.mubr.f32.mxu0 0.0
        %623 = vmatmul.mubr.f32.gmra.mxu0 %v496
        %v624 = vpop.f32.mrf.mxu0
        %v625 = vadd.f32 %v445, %v624
        %v626 = vpop.f32.mrf.mxu0
        %627 = vmatprep.mubr.f32.mxu0 0.0
        %628 = vmatmul.mubr.f32.gmra.mxu0 %v498
        %v629 = vpop.f32.mrf.mxu0
        %v630 = vadd.f32 %v450, %v629
        %v631 = vpop.f32.mrf.mxu0
        %632 = vmatprep.mubr.f32.mxu0 0.0
        %633 = vmatmul.mubr.f32.gmra.mxu0 %v500
        %v634 = vpop.f32.mrf.mxu0
        %v635 = vadd.f32 %v455, %v634
        %v636 = vpop.f32.mrf.mxu0
        %637 = vmatprep.mubr.f32.mxu0 0.0
        %638 = vmatmul.mubr.f32.gmra.mxu0 %v502
        %v639 = vpop.f32.mrf.mxu0
        %v640 = vadd.f32 %v460, %v639
        %v641 = vpop.f32.mrf.mxu0
        %642 = vmatprep.mubr.f32.mxu0 0.0
        %643 = vmatmul.mubr.f32.gmra.mxu0 %v504
        %v644 = vpop.f32.mrf.mxu0
        %v645 = vadd.f32 %v465, %v644
        %v646 = vpop.f32.mrf.mxu0
        %647 = vmatprep.mubr.f32.mxu0 0.0
        %648 = vmatmul.mubr.f32.gmra.mxu0 %v506
        %v649 = vpop.f32.mrf.mxu0
        %v650 = vadd.f32 %v470, %v649
        %v651 = vpop.f32.mrf.mxu0
        %652 = vmatprep.mubr.f32.mxu0 0.0
        %653 = vmatmul.mubr.f32.gmra.mxu0 %v508
        %v654 = vpop.f32.mrf.mxu0
        %v655 = vadd.f32 %v475, %v654
        %v656 = vpop.f32.mrf.mxu0
        %657 = vdwg.mxu0
        %vm658 = vcmask 1045504
        %v659 = vrot.slane %v198, 2
        %v660 = vrot.slane %v199, 2
        %v661 = vsel %vm658, %v659, %v660
        %v662 = vrot.slane %v200, 2
        %v663 = vsel %vm658, %v660, %v662
        %v664 = vrot.slane %v201, 2
        %v665 = vrot.slane %v202, 2
        %v666 = vsel %vm658, %v664, %v665
        %v667 = vrot.slane %v203, 2
        %v668 = vsel %vm658, %v665, %v667
        %v669 = vrot.slane %v204, 2
        %v670 = vrot.slane %v205, 2
        %v671 = vsel %vm658, %v669, %v670
        %v672 = vrot.slane %v206, 2
        %v673 = vsel %vm658, %v670, %v672
        %v674 = vrot.slane %v207, 2
        %v675 = vrot.slane %v208, 2
        %v676 = vsel %vm658, %v674, %v675
        %v677 = vrot.slane %v209, 2
        %v678 = vsel %vm658, %v675, %v677
        %v679 = vrot.slane %v210, 2
        %v680 = vrot.slane %v211, 2
        %v681 = vsel %vm658, %v679, %v680
        %v682 = vrot.slane %v212, 2
        %v683 = vsel %vm658, %v680, %v682
        %v684 = vrot.slane %v213, 2
        %v685 = vrot.slane %v214, 2
        %v686 = vsel %vm658, %v684, %v685
        %v687 = vrot.slane %v215, 2
        %v688 = vsel %vm658, %v685, %v687
        %v689 = vrot.slane %v216, 2
        %v690 = vrot.slane %v217, 2
        %v691 = vsel %vm658, %v689, %v690
        %v692 = vrot.slane %v218, 2
        %v693 = vsel %vm658, %v690, %v692
        %v694 = vrot.slane %v219, 2
        %v695 = vrot.slane %v220, 2
        %v696 = vsel %vm658, %v694, %v695
        %v697 = vrot.slane %v221, 2
        %v698 = vsel %vm658, %v695, %v697
        %s699 = scalar_lea.vmem %s1, 8
        %v700 = vld [vmem:[%s699] sm:$0xf]
        %v701 = vsel %vm296, %v661, 0
        %v703 = vsel %vm296, %v663, 0
        %v705 = vsel %vm296, %v666, 0
        %v707 = vsel %vm296, %v668, 0
        %v709 = vsel %vm296, %v671, 0
        %v711 = vsel %vm296, %v673, 0
        %v713 = vsel %vm296, %v676, 0
        %v715 = vsel %vm296, %v678, 0
        %v717 = vsel %vm296, %v681, 0
        %v719 = vsel %vm296, %v683, 0
        %v721 = vsel %vm296, %v686, 0
        %v723 = vsel %vm296, %v688, 0
        %v725 = vsel %vm296, %v691, 0
        %v727 = vsel %vm296, %v693, 0
        %v729 = vsel %vm296, %v696, 0
        %v731 = vsel %vm296, %v698, 0
        %v734 = vsel %vm329, %v700, 0
        %736 = vmatprep.subr.mxu0 0.0
        %737 = vmatpush1.msra.mxu0 0.0
        %738 = vmatprep.subr.mxu0 0.0
        %739 = vmatpush1.msra.mxu0 0.0
        %740 = vmatprep.subr.mxu0 0.0
        %741 = vmatpush1.msra.mxu0 0.0
        %742 = vmatprep.subr.mxu0 0.0
        %743 = vmatpush1.msra.mxu0 0.0
        %744 = vmatprep.subr.mxu0 0.0
        %745 = vmatpush1.msra.mxu0 0.0
        %746 = vmatprep.subr.mxu0 0.0
        %747 = vmatpush1.msra.mxu0 0.0
        %748 = vmatprep.subr.mxu0 0.0
        %749 = vmatpush1.msra.mxu0 0.0
        %750 = vmatprep.subr.mxu0 0.0
        %751 = vmatpush1.msra.mxu0 0.0
        %752 = vmatprep.subr.mxu0 0.0
        %753 = vmatpush1.msra.mxu0 0.0
        %754 = vmatprep.subr.mxu0 0.0
        %755 = vmatpush1.msra.mxu0 0.0
        %756 = vmatprep.subr.mxu0 0.0
        %757 = vmatpush1.msra.mxu0 0.0
        %758 = vmatprep.subr.mxu0 0.0
        %759 = vmatpush1.msra.mxu0 0.0
        %760 = vmatprep.subr.mxu0 0.0
        %761 = vmatpush1.msra.mxu0 0.0
        %762 = vmatprep.subr.mxu0 0.0
        %763 = vmatpush1.msra.mxu0 0.0
        %764 = vmatprep.subr.mxu0 0.0
        %765 = vmatpush1.msra.mxu0 0.0
        %766 = vmatprep.subr.mxu0 0.0
        %767 = vmatpush1.msra.mxu0 %v734
        %768 = vmatprep.subr.mxu0 0.0
        %769 = vmatpush2.msra.mxu0 0.0
        %770 = vmatprep.subr.mxu0 0.0
        %771 = vmatpush2.msra.mxu0 0.0
        %772 = vmatprep.subr.mxu0 0.0
        %773 = vmatpush2.msra.mxu0 0.0
        %774 = vmatprep.subr.mxu0 0.0
        %775 = vmatpush2.msra.mxu0 0.0
        %776 = vmatprep.subr.mxu0 0.0
        %777 = vmatpush2.msra.mxu0 0.0
        %778 = vmatprep.subr.mxu0 0.0
        %779 = vmatpush2.msra.mxu0 0.0
        %780 = vmatprep.subr.mxu0 0.0
        %781 = vmatpush2.msra.mxu0 0.0
        %782 = vmatprep.subr.mxu0 0.0
        %783 = vmatpush2.msra.mxu0 0.0
        %784 = vmatprep.subr.mxu0 0.0
        %785 = vmatpush2.msra.mxu0 0.0
        %786 = vmatprep.subr.mxu0 0.0
        %787 = vmatpush2.msra.mxu0 0.0
        %788 = vmatprep.subr.mxu0 0.0
        %789 = vmatpush2.msra.mxu0 0.0
        %790 = vmatprep.subr.mxu0 0.0
        %791 = vmatpush2.msra.mxu0 0.0
        %792 = vmatprep.subr.mxu0 0.0
        %793 = vmatpush2.msra.mxu0 0.0
        %794 = vmatprep.subr.mxu0 0.0
        %795 = vmatpush2.msra.mxu0 0.0
        %796 = vmatprep.subr.mxu0 0.0
        %797 = vmatpush2.msra.mxu0 0.0
        %798 = vmatprep.subr.mxu0 0.0
        %799 = vmatpush2.msra.mxu0 0.0
        %800 = vmatprep.mubr.f32.mxu0 0.0
        %801 = vmatmul.mubr.f32.gmra.mxu0 %v701
        %v802 = vpop.f32.mrf.mxu0
        %v803 = vadd.f32 0.0, %v802
        %v804 = vpop.f32.mrf.mxu0
        %805 = vmatprep.mubr.f32.mxu0 0.0
        %806 = vmatmul.mubr.f32.gmra.mxu0 %v703
        %v807 = vpop.f32.mrf.mxu0
        %v808 = vadd.f32 0.0, %v807
        %v809 = vpop.f32.mrf.mxu0
        %810 = vmatprep.mubr.f32.mxu0 0.0
        %811 = vmatmul.mubr.f32.gmra.mxu0 %v705
        %v812 = vpop.f32.mrf.mxu0
        %v813 = vadd.f32 0.0, %v812
        %v814 = vpop.f32.mrf.mxu0
        %815 = vmatprep.mubr.f32.mxu0 0.0
        %816 = vmatmul.mubr.f32.gmra.mxu0 %v707
        %v817 = vpop.f32.mrf.mxu0
        %v818 = vadd.f32 0.0, %v817
        %v819 = vpop.f32.mrf.mxu0
        %820 = vmatprep.mubr.f32.mxu0 0.0
        %821 = vmatmul.mubr.f32.gmra.mxu0 %v709
        %v822 = vpop.f32.mrf.mxu0
        %v823 = vadd.f32 0.0, %v822
        %v824 = vpop.f32.mrf.mxu0
        %825 = vmatprep.mubr.f32.mxu0 0.0
        %826 = vmatmul.mubr.f32.gmra.mxu0 %v711
        %v827 = vpop.f32.mrf.mxu0
        %v828 = vadd.f32 0.0, %v827
        %v829 = vpop.f32.mrf.mxu0
        %830 = vmatprep.mubr.f32.mxu0 0.0
        %831 = vmatmul.mubr.f32.gmra.mxu0 %v713
        %v832 = vpop.f32.mrf.mxu0
        %v833 = vadd.f32 0.0, %v832
        %v834 = vpop.f32.mrf.mxu0
        %835 = vmatprep.mubr.f32.mxu0 0.0
        %836 = vmatmul.mubr.f32.gmra.mxu0 %v715
        %v837 = vpop.f32.mrf.mxu0
        %v838 = vadd.f32 0.0, %v837
        %v839 = vpop.f32.mrf.mxu0
        %840 = vmatprep.mubr.f32.mxu0 0.0
        %841 = vmatmul.mubr.f32.gmra.mxu0 %v717
        %v842 = vpop.f32.mrf.mxu0
        %v843 = vadd.f32 0.0, %v842
        %v844 = vpop.f32.mrf.mxu0
        %845 = vmatprep.mubr.f32.mxu0 0.0
        %846 = vmatmul.mubr.f32.gmra.mxu0 %v719
        %v847 = vpop.f32.mrf.mxu0
        %v848 = vadd.f32 0.0, %v847
        %v849 = vpop.f32.mrf.mxu0
        %850 = vmatprep.mubr.f32.mxu0 0.0
        %851 = vmatmul.mubr.f32.gmra.mxu0 %v721
        %v852 = vpop.f32.mrf.mxu0
        %v853 = vadd.f32 0.0, %v852
        %v854 = vpop.f32.mrf.mxu0
        %855 = vmatprep.mubr.f32.mxu0 0.0
        %856 = vmatmul.mubr.f32.gmra.mxu0 %v723
        %v857 = vpop.f32.mrf.mxu0
        %v858 = vadd.f32 0.0, %v857
        %v859 = vpop.f32.mrf.mxu0
        %860 = vmatprep.mubr.f32.mxu0 0.0
        %861 = vmatmul.mubr.f32.gmra.mxu0 %v725
        %v862 = vpop.f32.mrf.mxu0
        %v863 = vadd.f32 0.0, %v862
        %v864 = vpop.f32.mrf.mxu0
        %865 = vmatprep.mubr.f32.mxu0 0.0
        %866 = vmatmul.mubr.f32.gmra.mxu0 %v727
        %v867 = vpop.f32.mrf.mxu0
        %v868 = vadd.f32 0.0, %v867
        %v869 = vpop.f32.mrf.mxu0
        %870 = vmatprep.mubr.f32.mxu0 0.0
        %871 = vmatmul.mubr.f32.gmra.mxu0 %v729
        %v872 = vpop.f32.mrf.mxu0
        %v873 = vadd.f32 0.0, %v872
        %v874 = vpop.f32.mrf.mxu0
        %875 = vmatprep.mubr.f32.mxu0 0.0
        %876 = vmatmul.mubr.f32.gmra.mxu0 %v731
        %v877 = vpop.f32.mrf.mxu0
        %v878 = vadd.f32 0.0, %v877
        %v879 = vpop.f32.mrf.mxu0
        %880 = vdwg.mxu0
        %v881 = vadd.f32 %v580, %v803
        %v882 = vadd.f32 %v585, %v808
        %v883 = vadd.f32 %v590, %v813
        %v884 = vadd.f32 %v595, %v818
        %v885 = vadd.f32 %v600, %v823
        %v886 = vadd.f32 %v605, %v828
        %v887 = vadd.f32 %v610, %v833
        %v888 = vadd.f32 %v615, %v838
        %v889 = vadd.f32 %v620, %v843
        %v890 = vadd.f32 %v625, %v848
        %v891 = vadd.f32 %v630, %v853
        %v892 = vadd.f32 %v635, %v858
        %v893 = vadd.f32 %v640, %v863
        %v894 = vadd.f32 %v645, %v868
        %v895 = vadd.f32 %v650, %v873
        %v896 = vadd.f32 %v655, %v878
        %s897 = scalar_lea.vmem %s1, 12
        %v898 = vld [vmem:[%s897] sm:$0xf]
        %v900 = vsel %vm296, %v222, 0
        %v903 = vsel %vm296, %v223, 0
        %v906 = vsel %vm329, %v898, 0
        %908 = vmatprep.subr.mxu0 0.0
        %909 = vmatpush1.msra.mxu0 0.0
        %910 = vmatprep.subr.mxu0 0.0
        %911 = vmatpush1.msra.mxu0 0.0
        %912 = vmatprep.subr.mxu0 0.0
        %913 = vmatpush1.msra.mxu0 0.0
        %914 = vmatprep.subr.mxu0 0.0
        %915 = vmatpush1.msra.mxu0 0.0
        %916 = vmatprep.subr.mxu0 0.0
        %917 = vmatpush1.msra.mxu0 0.0
        %918 = vmatprep.subr.mxu0 0.0
        %919 = vmatpush1.msra.mxu0 0.0
        %920 = vmatprep.subr.mxu0 0.0
        %921 = vmatpush1.msra.mxu0 0.0
        %922 = vmatprep.subr.mxu0 0.0
        %923 = vmatpush1.msra.mxu0 0.0
        %924 = vmatprep.subr.mxu0 0.0
        %925 = vmatpush1.msra.mxu0 0.0
        %926 = vmatprep.subr.mxu0 0.0
        %927 = vmatpush1.msra.mxu0 0.0
        %928 = vmatprep.subr.mxu0 0.0
        %929 = vmatpush1.msra.mxu0 0.0
        %930 = vmatprep.subr.mxu0 0.0
        %931 = vmatpush1.msra.mxu0 0.0
        %932 = vmatprep.subr.mxu0 0.0
        %933 = vmatpush1.msra.mxu0 0.0
        %934 = vmatprep.subr.mxu0 0.0
        %935 = vmatpush1.msra.mxu0 0.0
        %936 = vmatprep.subr.mxu0 0.0
        %937 = vmatpush1.msra.mxu0 0.0
        %938 = vmatprep.subr.mxu0 0.0
        %939 = vmatpush1.msra.mxu0 %v906
        %940 = vmatprep.subr.mxu0 0.0
        %941 = vmatpush2.msra.mxu0 0.0
        %942 = vmatprep.subr.mxu0 0.0
        %943 = vmatpush2.msra.mxu0 0.0
        %944 = vmatprep.subr.mxu0 0.0
        %945 = vmatpush2.msra.mxu0 0.0
        %946 = vmatprep.subr.mxu0 0.0
        %947 = vmatpush2.msra.mxu0 0.0
        %948 = vmatprep.subr.mxu0 0.0
        %949 = vmatpush2.msra.mxu0 0.0
        %950 = vmatprep.subr.mxu0 0.0
        %951 = vmatpush2.msra.mxu0 0.0
        %952 = vmatprep.subr.mxu0 0.0
        %953 = vmatpush2.msra.mxu0 0.0
        %954 = vmatprep.subr.mxu0 0.0
        %955 = vmatpush2.msra.mxu0 0.0
        %956 = vmatprep.subr.mxu0 0.0
        %957 = vmatpush2.msra.mxu0 0.0
        %958 = vmatprep.subr.mxu0 0.0
        %959 = vmatpush2.msra.mxu0 0.0
        %960 = vmatprep.subr.mxu0 0.0
        %961 = vmatpush2.msra.mxu0 0.0
        %962 = vmatprep.subr.mxu0 0.0
        %963 = vmatpush2.msra.mxu0 0.0
        %964 = vmatprep.subr.mxu0 0.0
        %965 = vmatpush2.msra.mxu0 0.0
        %966 = vmatprep.subr.mxu0 0.0
        %967 = vmatpush2.msra.mxu0 0.0
        %968 = vmatprep.subr.mxu0 0.0
        %969 = vmatpush2.msra.mxu0 0.0
        %970 = vmatprep.subr.mxu0 0.0
        %971 = vmatpush2.msra.mxu0 0.0
        %972 = vmatprep.mubr.f32.mxu0 0.0
        %973 = vmatmul.mubr.f32.gmra.mxu0 %v482
        %v974 = vpop.f32.mrf.mxu0
        %v975 = vadd.f32 0.0, %v974
        %v976 = vpop.f32.mrf.mxu0
        %977 = vmatprep.mubr.f32.mxu0 0.0
        %978 = vmatmul.mubr.f32.gmra.mxu0 %v484
        %v979 = vpop.f32.mrf.mxu0
        %v980 = vadd.f32 0.0, %v979
        %v981 = vpop.f32.mrf.mxu0
        %982 = vmatprep.mubr.f32.mxu0 0.0
        %983 = vmatmul.mubr.f32.gmra.mxu0 %v486
        %v984 = vpop.f32.mrf.mxu0
        %v985 = vadd.f32 0.0, %v984
        %v986 = vpop.f32.mrf.mxu0
        %987 = vmatprep.mubr.f32.mxu0 0.0
        %988 = vmatmul.mubr.f32.gmra.mxu0 %v488
        %v989 = vpop.f32.mrf.mxu0
        %v990 = vadd.f32 0.0, %v989
        %v991 = vpop.f32.mrf.mxu0
        %992 = vmatprep.mubr.f32.mxu0 0.0
        %993 = vmatmul.mubr.f32.gmra.mxu0 %v490
        %v994 = vpop.f32.mrf.mxu0
        %v995 = vadd.f32 0.0, %v994
        %v996 = vpop.f32.mrf.mxu0
        %997 = vmatprep.mubr.f32.mxu0 0.0
        %998 = vmatmul.mubr.f32.gmra.mxu0 %v492
        %v999 = vpop.f32.mrf.mxu0
        %v1000 = vadd.f32 0.0, %v999
        %v1001 = vpop.f32.mrf.mxu0
        %1002 = vmatprep.mubr.f32.mxu0 0.0
        %1003 = vmatmul.mubr.f32.gmra.mxu0 %v494
        %v1004 = vpop.f32.mrf.mxu0
        %v1005 = vadd.f32 0.0, %v1004
        %v1006 = vpop.f32.mrf.mxu0
        %1007 = vmatprep.mubr.f32.mxu0 0.0
        %1008 = vmatmul.mubr.f32.gmra.mxu0 %v496
        %v1009 = vpop.f32.mrf.mxu0
        %v1010 = vadd.f32 0.0, %v1009
        %v1011 = vpop.f32.mrf.mxu0
        %1012 = vmatprep.mubr.f32.mxu0 0.0
        %1013 = vmatmul.mubr.f32.gmra.mxu0 %v498
        %v1014 = vpop.f32.mrf.mxu0
        %v1015 = vadd.f32 0.0, %v1014
        %v1016 = vpop.f32.mrf.mxu0
        %1017 = vmatprep.mubr.f32.mxu0 0.0
        %1018 = vmatmul.mubr.f32.gmra.mxu0 %v500
        %v1019 = vpop.f32.mrf.mxu0
        %v1020 = vadd.f32 0.0, %v1019
        %v1021 = vpop.f32.mrf.mxu0
        %1022 = vmatprep.mubr.f32.mxu0 0.0
        %1023 = vmatmul.mubr.f32.gmra.mxu0 %v502
        %v1024 = vpop.f32.mrf.mxu0
        %v1025 = vadd.f32 0.0, %v1024
        %v1026 = vpop.f32.mrf.mxu0
        %1027 = vmatprep.mubr.f32.mxu0 0.0
        %1028 = vmatmul.mubr.f32.gmra.mxu0 %v504
        %v1029 = vpop.f32.mrf.mxu0
        %v1030 = vadd.f32 0.0, %v1029
        %v1031 = vpop.f32.mrf.mxu0
        %1032 = vmatprep.mubr.f32.mxu0 0.0
        %1033 = vmatmul.mubr.f32.gmra.mxu0 %v506
        %v1034 = vpop.f32.mrf.mxu0
        %v1035 = vadd.f32 0.0, %v1034
        %v1036 = vpop.f32.mrf.mxu0
        %1037 = vmatprep.mubr.f32.mxu0 0.0
        %1038 = vmatmul.mubr.f32.gmra.mxu0 %v508
        %v1039 = vpop.f32.mrf.mxu0
        %v1040 = vadd.f32 0.0, %v1039
        %v1041 = vpop.f32.mrf.mxu0
        %1042 = vmatprep.mubr.f32.mxu0 0.0
        %1043 = vmatmul.mubr.f32.gmra.mxu0 %v900
        %v1044 = vpop.f32.mrf.mxu0
        %v1045 = vadd.f32 0.0, %v1044
        %v1046 = vpop.f32.mrf.mxu0
        %1047 = vmatprep.mubr.f32.mxu0 0.0
        %1048 = vmatmul.mubr.f32.gmra.mxu0 %v903
        %v1049 = vpop.f32.mrf.mxu0
        %v1050 = vadd.f32 0.0, %v1049
        %v1051 = vpop.f32.mrf.mxu0
        %1052 = vdwg.mxu0
        %v1053 = vadd.f32 %v881, %v975
        %v1054 = vadd.f32 %v882, %v980
        %v1055 = vadd.f32 %v883, %v985
        %v1056 = vadd.f32 %v884, %v990
        %v1057 = vadd.f32 %v885, %v995
        %v1058 = vadd.f32 %v886, %v1000
        %v1059 = vadd.f32 %v887, %v1005
        %v1060 = vadd.f32 %v888, %v1010
        %v1061 = vadd.f32 %v889, %v1015
        %v1062 = vadd.f32 %v890, %v1020
        %v1063 = vadd.f32 %v891, %v1025
        %v1064 = vadd.f32 %v892, %v1030
        %v1065 = vadd.f32 %v893, %v1035
        %v1066 = vadd.f32 %v894, %v1040
        %v1067 = vadd.f32 %v895, %v1045
        %v1068 = vadd.f32 %v896, %v1050
        %v1070 = vrot.slane %v222, 1
        %v1071 = vrot.slane %v223, 1
        %v1072 = vsel %vm253, %v1070, %v1071
        %v1073 = vrot.slane %v224, 1
        %v1074 = vsel %vm253, %v1071, %v1073
        %s1075 = scalar_lea.vmem %s1, 16
        %v1076 = vld [vmem:[%s1075] sm:$0xf]
        %v1077 = vsel %vm296, %v1072, 0
        %v1079 = vsel %vm296, %v1074, 0
        %v1082 = vsel %vm329, %v1076, 0
        %1084 = vmatprep.subr.mxu0 0.0
        %1085 = vmatpush1.msra.mxu0 0.0
        %1086 = vmatprep.subr.mxu0 0.0
        %1087 = vmatpush1.msra.mxu0 0.0
        %1088 = vmatprep.subr.mxu0 0.0
        %1089 = vmatpush1.msra.mxu0 0.0
        %1090 = vmatprep.subr.mxu0 0.0
        %1091 = vmatpush1.msra.mxu0 0.0
        %1092 = vmatprep.subr.mxu0 0.0
        %1093 = vmatpush1.msra.mxu0 0.0
        %1094 = vmatprep.subr.mxu0 0.0
        %1095 = vmatpush1.msra.mxu0 0.0
        %1096 = vmatprep.subr.mxu0 0.0
        %1097 = vmatpush1.msra.mxu0 0.0
        %1098 = vmatprep.subr.mxu0 0.0
        %1099 = vmatpush1.msra.mxu0 0.0
        %1100 = vmatprep.subr.mxu0 0.0
        %1101 = vmatpush1.msra.mxu0 0.0
        %1102 = vmatprep.subr.mxu0 0.0
        %1103 = vmatpush1.msra.mxu0 0.0
        %1104 = vmatprep.subr.mxu0 0.0
        %1105 = vmatpush1.msra.mxu0 0.0
        %1106 = vmatprep.subr.mxu0 0.0
        %1107 = vmatpush1.msra.mxu0 0.0
        %1108 = vmatprep.subr.mxu0 0.0
        %1109 = vmatpush1.msra.mxu0 0.0
        %1110 = vmatprep.subr.mxu0 0.0
        %1111 = vmatpush1.msra.mxu0 0.0
        %1112 = vmatprep.subr.mxu0 0.0
        %1113 = vmatpush1.msra.mxu0 0.0
        %1114 = vmatprep.subr.mxu0 0.0
        %1115 = vmatpush1.msra.mxu0 %v1082
        %1116 = vmatprep.subr.mxu0 0.0
        %1117 = vmatpush2.msra.mxu0 0.0
        %1118 = vmatprep.subr.mxu0 0.0
        %1119 = vmatpush2.msra.mxu0 0.0
        %1120 = vmatprep.subr.mxu0 0.0
        %1121 = vmatpush2.msra.mxu0 0.0
        %1122 = vmatprep.subr.mxu0 0.0
        %1123 = vmatpush2.msra.mxu0 0.0
        %1124 = vmatprep.subr.mxu0 0.0
        %1125 = vmatpush2.msra.mxu0 0.0
        %1126 = vmatprep.subr.mxu0 0.0
        %1127 = vmatpush2.msra.mxu0 0.0
        %1128 = vmatprep.subr.mxu0 0.0
        %1129 = vmatpush2.msra.mxu0 0.0
        %1130 = vmatprep.subr.mxu0 0.0
        %1131 = vmatpush2.msra.mxu0 0.0
        %1132 = vmatprep.subr.mxu0 0.0
        %1133 = vmatpush2.msra.mxu0 0.0
        %1134 = vmatprep.subr.mxu0 0.0
        %1135 = vmatpush2.msra.mxu0 0.0
        %1136 = vmatprep.subr.mxu0 0.0
        %1137 = vmatpush2.msra.mxu0 0.0
        %1138 = vmatprep.subr.mxu0 0.0
        %1139 = vmatpush2.msra.mxu0 0.0
        %1140 = vmatprep.subr.mxu0 0.0
        %1141 = vmatpush2.msra.mxu0 0.0
        %1142 = vmatprep.subr.mxu0 0.0
        %1143 = vmatpush2.msra.mxu0 0.0
        %1144 = vmatprep.subr.mxu0 0.0
        %1145 = vmatpush2.msra.mxu0 0.0
        %1146 = vmatprep.subr.mxu0 0.0
        %1147 = vmatpush2.msra.mxu0 0.0
        %1148 = vmatprep.mubr.f32.mxu0 0.0
        %1149 = vmatmul.mubr.f32.gmra.mxu0 %v301
        %v1150 = vpop.f32.mrf.mxu0
        %v1151 = vadd.f32 0.0, %v1150
        %v1152 = vpop.f32.mrf.mxu0
        %1153 = vmatprep.mubr.f32.mxu0 0.0
        %1154 = vmatmul.mubr.f32.gmra.mxu0 %v303
        %v1155 = vpop.f32.mrf.mxu0
        %v1156 = vadd.f32 0.0, %v1155
        %v1157 = vpop.f32.mrf.mxu0
        %1158 = vmatprep.mubr.f32.mxu0 0.0
        %1159 = vmatmul.mubr.f32.gmra.mxu0 %v305
        %v1160 = vpop.f32.mrf.mxu0
        %v1161 = vadd.f32 0.0, %v1160
        %v1162 = vpop.f32.mrf.mxu0
        %1163 = vmatprep.mubr.f32.mxu0 0.0
        %1164 = vmatmul.mubr.f32.gmra.mxu0 %v307
        %v1165 = vpop.f32.mrf.mxu0
        %v1166 = vadd.f32 0.0, %v1165
        %v1167 = vpop.f32.mrf.mxu0
        %1168 = vmatprep.mubr.f32.mxu0 0.0
        %1169 = vmatmul.mubr.f32.gmra.mxu0 %v309
        %v1170 = vpop.f32.mrf.mxu0
        %v1171 = vadd.f32 0.0, %v1170
        %v1172 = vpop.f32.mrf.mxu0
        %1173 = vmatprep.mubr.f32.mxu0 0.0
        %1174 = vmatmul.mubr.f32.gmra.mxu0 %v311
        %v1175 = vpop.f32.mrf.mxu0
        %v1176 = vadd.f32 0.0, %v1175
        %v1177 = vpop.f32.mrf.mxu0
        %1178 = vmatprep.mubr.f32.mxu0 0.0
        %1179 = vmatmul.mubr.f32.gmra.mxu0 %v313
        %v1180 = vpop.f32.mrf.mxu0
        %v1181 = vadd.f32 0.0, %v1180
        %v1182 = vpop.f32.mrf.mxu0
        %1183 = vmatprep.mubr.f32.mxu0 0.0
        %1184 = vmatmul.mubr.f32.gmra.mxu0 %v315
        %v1185 = vpop.f32.mrf.mxu0
        %v1186 = vadd.f32 0.0, %v1185
        %v1187 = vpop.f32.mrf.mxu0
        %1188 = vmatprep.mubr.f32.mxu0 0.0
        %1189 = vmatmul.mubr.f32.gmra.mxu0 %v317
        %v1190 = vpop.f32.mrf.mxu0
        %v1191 = vadd.f32 0.0, %v1190
        %v1192 = vpop.f32.mrf.mxu0
        %1193 = vmatprep.mubr.f32.mxu0 0.0
        %1194 = vmatmul.mubr.f32.gmra.mxu0 %v319
        %v1195 = vpop.f32.mrf.mxu0
        %v1196 = vadd.f32 0.0, %v1195
        %v1197 = vpop.f32.mrf.mxu0
        %1198 = vmatprep.mubr.f32.mxu0 0.0
        %1199 = vmatmul.mubr.f32.gmra.mxu0 %v321
        %v1200 = vpop.f32.mrf.mxu0
        %v1201 = vadd.f32 0.0, %v1200
        %v1202 = vpop.f32.mrf.mxu0
        %1203 = vmatprep.mubr.f32.mxu0 0.0
        %1204 = vmatmul.mubr.f32.gmra.mxu0 %v323
        %v1205 = vpop.f32.mrf.mxu0
        %v1206 = vadd.f32 0.0, %v1205
        %v1207 = vpop.f32.mrf.mxu0
        %1208 = vmatprep.mubr.f32.mxu0 0.0
        %1209 = vmatmul.mubr.f32.gmra.mxu0 %v325
        %v1210 = vpop.f32.mrf.mxu0
        %v1211 = vadd.f32 0.0, %v1210
        %v1212 = vpop.f32.mrf.mxu0
        %1213 = vmatprep.mubr.f32.mxu0 0.0
        %1214 = vmatmul.mubr.f32.gmra.mxu0 %v327
        %v1215 = vpop.f32.mrf.mxu0
        %v1216 = vadd.f32 0.0, %v1215
        %v1217 = vpop.f32.mrf.mxu0
        %1218 = vmatprep.mubr.f32.mxu0 0.0
        %1219 = vmatmul.mubr.f32.gmra.mxu0 %v1077
        %v1220 = vpop.f32.mrf.mxu0
        %v1221 = vadd.f32 0.0, %v1220
        %v1222 = vpop.f32.mrf.mxu0
        %1223 = vmatprep.mubr.f32.mxu0 0.0
        %1224 = vmatmul.mubr.f32.gmra.mxu0 %v1079
        %v1225 = vpop.f32.mrf.mxu0
        %v1226 = vadd.f32 0.0, %v1225
        %v1227 = vpop.f32.mrf.mxu0
        %1228 = vdwg.mxu0
        %v1229 = vadd.f32 %v1053, %v1151
        %v1230 = vadd.f32 %v1054, %v1156
        %v1231 = vadd.f32 %v1055, %v1161
        %v1232 = vadd.f32 %v1056, %v1166
        %v1233 = vadd.f32 %v1057, %v1171
        %v1234 = vadd.f32 %v1058, %v1176
        %v1235 = vadd.f32 %v1059, %v1181
        %v1236 = vadd.f32 %v1060, %v1186
        %v1237 = vadd.f32 %v1061, %v1191
        %v1238 = vadd.f32 %v1062, %v1196
        %v1239 = vadd.f32 %v1063, %v1201
        %v1240 = vadd.f32 %v1064, %v1206
        %v1241 = vadd.f32 %v1065, %v1211
        %v1242 = vadd.f32 %v1066, %v1216
        %v1243 = vadd.f32 %v1067, %v1221
        %v1244 = vadd.f32 %v1068, %v1226
        %v1245 = vrot.slane %v222, 2
        %v1246 = vrot.slane %v223, 2
        %v1247 = vsel %vm658, %v1245, %v1246
        %v1248 = vrot.slane %v224, 2
        %v1249 = vsel %vm658, %v1246, %v1248
        %s1250 = scalar_lea.vmem %s1, 20
        %v1251 = vld [vmem:[%s1250] sm:$0xf]
        %v1252 = vsel %vm296, %v1247, 0
        %v1254 = vsel %vm296, %v1249, 0
        %v1257 = vsel %vm329, %v1251, 0
        %1259 = vmatprep.subr.mxu0 0.0
        %1260 = vmatpush1.msra.mxu0 0.0
        %1261 = vmatprep.subr.mxu0 0.0
        %1262 = vmatpush1.msra.mxu0 0.0
        %1263 = vmatprep.subr.mxu0 0.0
        %1264 = vmatpush1.msra.mxu0 0.0
        %1265 = vmatprep.subr.mxu0 0.0
        %1266 = vmatpush1.msra.mxu0 0.0
        %1267 = vmatprep.subr.mxu0 0.0
        %1268 = vmatpush1.msra.mxu0 0.0
        %1269 = vmatprep.subr.mxu0 0.0
        %1270 = vmatpush1.msra.mxu0 0.0
        %1271 = vmatprep.subr.mxu0 0.0
        %1272 = vmatpush1.msra.mxu0 0.0
        %1273 = vmatprep.subr.mxu0 0.0
        %1274 = vmatpush1.msra.mxu0 0.0
        %1275 = vmatprep.subr.mxu0 0.0
        %1276 = vmatpush1.msra.mxu0 0.0
        %1277 = vmatprep.subr.mxu0 0.0
        %1278 = vmatpush1.msra.mxu0 0.0
        %1279 = vmatprep.subr.mxu0 0.0
        %1280 = vmatpush1.msra.mxu0 0.0
        %1281 = vmatprep.subr.mxu0 0.0
        %1282 = vmatpush1.msra.mxu0 0.0
        %1283 = vmatprep.subr.mxu0 0.0
        %1284 = vmatpush1.msra.mxu0 0.0
        %1285 = vmatprep.subr.mxu0 0.0
        %1286 = vmatpush1.msra.mxu0 0.0
        %1287 = vmatprep.subr.mxu0 0.0
        %1288 = vmatpush1.msra.mxu0 0.0
        %1289 = vmatprep.subr.mxu0 0.0
        %1290 = vmatpush1.msra.mxu0 %v1257
        %1291 = vmatprep.subr.mxu0 0.0
        %1292 = vmatpush2.msra.mxu0 0.0
        %1293 = vmatprep.subr.mxu0 0.0
        %1294 = vmatpush2.msra.mxu0 0.0
        %1295 = vmatprep.subr.mxu0 0.0
        %1296 = vmatpush2.msra.mxu0 0.0
        %1297 = vmatprep.subr.mxu0 0.0
        %1298 = vmatpush2.msra.mxu0 0.0
        %1299 = vmatprep.subr.mxu0 0.0
        %1300 = vmatpush2.msra.mxu0 0.0
        %1301 = vmatprep.subr.mxu0 0.0
        %1302 = vmatpush2.msra.mxu0 0.0
        %1303 = vmatprep.subr.mxu0 0.0
        %1304 = vmatpush2.msra.mxu0 0.0
        %1305 = vmatprep.subr.mxu0 0.0
        %1306 = vmatpush2.msra.mxu0 0.0
        %1307 = vmatprep.subr.mxu0 0.0
        %1308 = vmatpush2.msra.mxu0 0.0
        %1309 = vmatprep.subr.mxu0 0.0
        %1310 = vmatpush2.msra.mxu0 0.0
        %1311 = vmatprep.subr.mxu0 0.0
        %1312 = vmatpush2.msra.mxu0 0.0
        %1313 = vmatprep.subr.mxu0 0.0
        %1314 = vmatpush2.msra.mxu0 0.0
        %1315 = vmatprep.subr.mxu0 0.0
        %1316 = vmatpush2.msra.mxu0 0.0
        %1317 = vmatprep.subr.mxu0 0.0
        %1318 = vmatpush2.msra.mxu0 0.0
        %1319 = vmatprep.subr.mxu0 0.0
        %1320 = vmatpush2.msra.mxu0 0.0
        %1321 = vmatprep.subr.mxu0 0.0
        %1322 = vmatpush2.msra.mxu0 0.0
        %1323 = vmatprep.mubr.f32.mxu0 0.0
        %1324 = vmatmul.mubr.f32.gmra.mxu0 %v705
        %v1325 = vpop.f32.mrf.mxu0
        %v1326 = vadd.f32 0.0, %v1325
        %v1327 = vpop.f32.mrf.mxu0
        %1328 = vmatprep.mubr.f32.mxu0 0.0
        %1329 = vmatmul.mubr.f32.gmra.mxu0 %v707
        %v1330 = vpop.f32.mrf.mxu0
        %v1331 = vadd.f32 0.0, %v1330
        %v1332 = vpop.f32.mrf.mxu0
        %1333 = vmatprep.mubr.f32.mxu0 0.0
        %1334 = vmatmul.mubr.f32.gmra.mxu0 %v709
        %v1335 = vpop.f32.mrf.mxu0
        %v1336 = vadd.f32 0.0, %v1335
        %v1337 = vpop.f32.mrf.mxu0
        %1338 = vmatprep.mubr.f32.mxu0 0.0
        %1339 = vmatmul.mubr.f32.gmra.mxu0 %v711
        %v1340 = vpop.f32.mrf.mxu0
        %v1341 = vadd.f32 0.0, %v1340
        %v1342 = vpop.f32.mrf.mxu0
        %1343 = vmatprep.mubr.f32.mxu0 0.0
        %1344 = vmatmul.mubr.f32.gmra.mxu0 %v713
        %v1345 = vpop.f32.mrf.mxu0
        %v1346 = vadd.f32 0.0, %v1345
        %v1347 = vpop.f32.mrf.mxu0
        %1348 = vmatprep.mubr.f32.mxu0 0.0
        %1349 = vmatmul.mubr.f32.gmra.mxu0 %v715
        %v1350 = vpop.f32.mrf.mxu0
        %v1351 = vadd.f32 0.0, %v1350
        %v1352 = vpop.f32.mrf.mxu0
        %1353 = vmatprep.mubr.f32.mxu0 0.0
        %1354 = vmatmul.mubr.f32.gmra.mxu0 %v717
        %v1355 = vpop.f32.mrf.mxu0
        %v1356 = vadd.f32 0.0, %v1355
        %v1357 = vpop.f32.mrf.mxu0
        %1358 = vmatprep.mubr.f32.mxu0 0.0
        %1359 = vmatmul.mubr.f32.gmra.mxu0 %v719
        %v1360 = vpop.f32.mrf.mxu0
        %v1361 = vadd.f32 0.0, %v1360
        %v1362 = vpop.f32.mrf.mxu0
        %1363 = vmatprep.mubr.f32.mxu0 0.0
        %1364 = vmatmul.mubr.f32.gmra.mxu0 %v721
        %v1365 = vpop.f32.mrf.mxu0
        %v1366 = vadd.f32 0.0, %v1365
        %v1367 = vpop.f32.mrf.mxu0
        %1368 = vmatprep.mubr.f32.mxu0 0.0
        %1369 = vmatmul.mubr.f32.gmra.mxu0 %v723
        %v1370 = vpop.f32.mrf.mxu0
        %v1371 = vadd.f32 0.0, %v1370
        %v1372 = vpop.f32.mrf.mxu0
        %1373 = vmatprep.mubr.f32.mxu0 0.0
        %1374 = vmatmul.mubr.f32.gmra.mxu0 %v725
        %v1375 = vpop.f32.mrf.mxu0
        %v1376 = vadd.f32 0.0, %v1375
        %v1377 = vpop.f32.mrf.mxu0
        %1378 = vmatprep.mubr.f32.mxu0 0.0
        %1379 = vmatmul.mubr.f32.gmra.mxu0 %v727
        %v1380 = vpop.f32.mrf.mxu0
        %v1381 = vadd.f32 0.0, %v1380
        %v1382 = vpop.f32.mrf.mxu0
        %1383 = vmatprep.mubr.f32.mxu0 0.0
        %1384 = vmatmul.mubr.f32.gmra.mxu0 %v729
        %v1385 = vpop.f32.mrf.mxu0
        %v1386 = vadd.f32 0.0, %v1385
        %v1387 = vpop.f32.mrf.mxu0
        %1388 = vmatprep.mubr.f32.mxu0 0.0
        %1389 = vmatmul.mubr.f32.gmra.mxu0 %v731
        %v1390 = vpop.f32.mrf.mxu0
        %v1391 = vadd.f32 0.0, %v1390
        %v1392 = vpop.f32.mrf.mxu0
        %1393 = vmatprep.mubr.f32.mxu0 0.0
        %1394 = vmatmul.mubr.f32.gmra.mxu0 %v1252
        %v1395 = vpop.f32.mrf.mxu0
        %v1396 = vadd.f32 0.0, %v1395
        %v1397 = vpop.f32.mrf.mxu0
        %1398 = vmatprep.mubr.f32.mxu0 0.0
        %1399 = vmatmul.mubr.f32.gmra.mxu0 %v1254
        %v1400 = vpop.f32.mrf.mxu0
        %v1401 = vadd.f32 0.0, %v1400
        %v1402 = vpop.f32.mrf.mxu0
        %1403 = vdwg.mxu0
        %v1404 = vadd.f32 %v1229, %v1326
        %v1405 = vadd.f32 %v1230, %v1331
        %v1406 = vadd.f32 %v1231, %v1336
        %v1407 = vadd.f32 %v1232, %v1341
        %v1408 = vadd.f32 %v1233, %v1346
        %v1409 = vadd.f32 %v1234, %v1351
        %v1410 = vadd.f32 %v1235, %v1356
        %v1411 = vadd.f32 %v1236, %v1361
        %v1412 = vadd.f32 %v1237, %v1366
        %v1413 = vadd.f32 %v1238, %v1371
        %v1414 = vadd.f32 %v1239, %v1376
        %v1415 = vadd.f32 %v1240, %v1381
        %v1416 = vadd.f32 %v1241, %v1386
        %v1417 = vadd.f32 %v1242, %v1391
        %v1418 = vadd.f32 %v1243, %v1396
        %v1419 = vadd.f32 %v1244, %v1401
        %s1420 = scalar_lea.vmem %s1, 24
        %v1421 = vld [vmem:[%s1420] sm:$0xf]
        %v1423 = vsel %vm296, %v225, 0
        %v1426 = vsel %vm296, %v226, 0
        %v1429 = vsel %vm329, %v1421, 0
        %1431 = vmatprep.subr.mxu0 0.0
        %1432 = vmatpush1.msra.mxu0 0.0
        %1433 = vmatprep.subr.mxu0 0.0
        %1434 = vmatpush1.msra.mxu0 0.0
        %1435 = vmatprep.subr.mxu0 0.0
        %1436 = vmatpush1.msra.mxu0 0.0
        %1437 = vmatprep.subr.mxu0 0.0
        %1438 = vmatpush1.msra.mxu0 0.0
        %1439 = vmatprep.subr.mxu0 0.0
        %1440 = vmatpush1.msra.mxu0 0.0
        %1441 = vmatprep.subr.mxu0 0.0
        %1442 = vmatpush1.msra.mxu0 0.0
        %1443 = vmatprep.subr.mxu0 0.0
        %1444 = vmatpush1.msra.mxu0 0.0
        %1445 = vmatprep.subr.mxu0 0.0
        %1446 = vmatpush1.msra.mxu0 0.0
        %1447 = vmatprep.subr.mxu0 0.0
        %1448 = vmatpush1.msra.mxu0 0.0
        %1449 = vmatprep.subr.mxu0 0.0
        %1450 = vmatpush1.msra.mxu0 0.0
        %1451 = vmatprep.subr.mxu0 0.0
        %1452 = vmatpush1.msra.mxu0 0.0
        %1453 = vmatprep.subr.mxu0 0.0
        %1454 = vmatpush1.msra.mxu0 0.0
        %1455 = vmatprep.subr.mxu0 0.0
        %1456 = vmatpush1.msra.mxu0 0.0
        %1457 = vmatprep.subr.mxu0 0.0
        %1458 = vmatpush1.msra.mxu0 0.0
        %1459 = vmatprep.subr.mxu0 0.0
        %1460 = vmatpush1.msra.mxu0 0.0
        %1461 = vmatprep.subr.mxu0 0.0
        %1462 = vmatpush1.msra.mxu0 %v1429
        %1463 = vmatprep.subr.mxu0 0.0
        %1464 = vmatpush2.msra.mxu0 0.0
        %1465 = vmatprep.subr.mxu0 0.0
        %1466 = vmatpush2.msra.mxu0 0.0
        %1467 = vmatprep.subr.mxu0 0.0
        %1468 = vmatpush2.msra.mxu0 0.0
        %1469 = vmatprep.subr.mxu0 0.0
        %1470 = vmatpush2.msra.mxu0 0.0
        %1471 = vmatprep.subr.mxu0 0.0
        %1472 = vmatpush2.msra.mxu0 0.0
        %1473 = vmatprep.subr.mxu0 0.0
        %1474 = vmatpush2.msra.mxu0 0.0
        %1475 = vmatprep.subr.mxu0 0.0
        %1476 = vmatpush2.msra.mxu0 0.0
        %1477 = vmatprep.subr.mxu0 0.0
        %1478 = vmatpush2.msra.mxu0 0.0
        %1479 = vmatprep.subr.mxu0 0.0
        %1480 = vmatpush2.msra.mxu0 0.0
        %1481 = vmatprep.subr.mxu0 0.0
        %1482 = vmatpush2.msra.mxu0 0.0
        %1483 = vmatprep.subr.mxu0 0.0
        %1484 = vmatpush2.msra.mxu0 0.0
        %1485 = vmatprep.subr.mxu0 0.0
        %1486 = vmatpush2.msra.mxu0 0.0
        %1487 = vmatprep.subr.mxu0 0.0
        %1488 = vmatpush2.msra.mxu0 0.0
        %1489 = vmatprep.subr.mxu0 0.0
        %1490 = vmatpush2.msra.mxu0 0.0
        %1491 = vmatprep.subr.mxu0 0.0
        %1492 = vmatpush2.msra.mxu0 0.0
        %1493 = vmatprep.subr.mxu0 0.0
        %1494 = vmatpush2.msra.mxu0 0.0
        %1495 = vmatprep.mubr.f32.mxu0 0.0
        %1496 = vmatmul.mubr.f32.gmra.mxu0 %v486
        %v1497 = vpop.f32.mrf.mxu0
        %v1498 = vadd.f32 0.0, %v1497
        %v1499 = vpop.f32.mrf.mxu0
        %1500 = vmatprep.mubr.f32.mxu0 0.0
        %1501 = vmatmul.mubr.f32.gmra.mxu0 %v488
        %v1502 = vpop.f32.mrf.mxu0
        %v1503 = vadd.f32 0.0, %v1502
        %v1504 = vpop.f32.mrf.mxu0
        %1505 = vmatprep.mubr.f32.mxu0 0.0
        %1506 = vmatmul.mubr.f32.gmra.mxu0 %v490
        %v1507 = vpop.f32.mrf.mxu0
        %v1508 = vadd.f32 0.0, %v1507
        %v1509 = vpop.f32.mrf.mxu0
        %1510 = vmatprep.mubr.f32.mxu0 0.0
        %1511 = vmatmul.mubr.f32.gmra.mxu0 %v492
        %v1512 = vpop.f32.mrf.mxu0
        %v1513 = vadd.f32 0.0, %v1512
        %v1514 = vpop.f32.mrf.mxu0
        %1515 = vmatprep.mubr.f32.mxu0 0.0
        %1516 = vmatmul.mubr.f32.gmra.mxu0 %v494
        %v1517 = vpop.f32.mrf.mxu0
        %v1518 = vadd.f32 0.0, %v1517
        %v1519 = vpop.f32.mrf.mxu0
        %1520 = vmatprep.mubr.f32.mxu0 0.0
        %1521 = vmatmul.mubr.f32.gmra.mxu0 %v496
        %v1522 = vpop.f32.mrf.mxu0
        %v1523 = vadd.f32 0.0, %v1522
        %v1524 = vpop.f32.mrf.mxu0
        %1525 = vmatprep.mubr.f32.mxu0 0.0
        %1526 = vmatmul.mubr.f32.gmra.mxu0 %v498
        %v1527 = vpop.f32.mrf.mxu0
        %v1528 = vadd.f32 0.0, %v1527
        %v1529 = vpop.f32.mrf.mxu0
        %1530 = vmatprep.mubr.f32.mxu0 0.0
        %1531 = vmatmul.mubr.f32.gmra.mxu0 %v500
        %v1532 = vpop.f32.mrf.mxu0
        %v1533 = vadd.f32 0.0, %v1532
        %v1534 = vpop.f32.mrf.mxu0
        %1535 = vmatprep.mubr.f32.mxu0 0.0
        %1536 = vmatmul.mubr.f32.gmra.mxu0 %v502
        %v1537 = vpop.f32.mrf.mxu0
        %v1538 = vadd.f32 0.0, %v1537
        %v1539 = vpop.f32.mrf.mxu0
        %1540 = vmatprep.mubr.f32.mxu0 0.0
        %1541 = vmatmul.mubr.f32.gmra.mxu0 %v504
        %v1542 = vpop.f32.mrf.mxu0
        %v1543 = vadd.f32 0.0, %v1542
        %v1544 = vpop.f32.mrf.mxu0
        %1545 = vmatprep.mubr.f32.mxu0 0.0
        %1546 = vmatmul.mubr.f32.gmra.mxu0 %v506
        %v1547 = vpop.f32.mrf.mxu0
        %v1548 = vadd.f32 0.0, %v1547
        %v1549 = vpop.f32.mrf.mxu0
        %1550 = vmatprep.mubr.f32.mxu0 0.0
        %1551 = vmatmul.mubr.f32.gmra.mxu0 %v508
        %v1552 = vpop.f32.mrf.mxu0
        %v1553 = vadd.f32 0.0, %v1552
        %v1554 = vpop.f32.mrf.mxu0
        %1555 = vmatprep.mubr.f32.mxu0 0.0
        %1556 = vmatmul.mubr.f32.gmra.mxu0 %v900
        %v1557 = vpop.f32.mrf.mxu0
        %v1558 = vadd.f32 0.0, %v1557
        %v1559 = vpop.f32.mrf.mxu0
        %1560 = vmatprep.mubr.f32.mxu0 0.0
        %1561 = vmatmul.mubr.f32.gmra.mxu0 %v903
        %v1562 = vpop.f32.mrf.mxu0
        %v1563 = vadd.f32 0.0, %v1562
        %v1564 = vpop.f32.mrf.mxu0
        %1565 = vmatprep.mubr.f32.mxu0 0.0
        %1566 = vmatmul.mubr.f32.gmra.mxu0 %v1423
        %v1567 = vpop.f32.mrf.mxu0
        %v1568 = vadd.f32 0.0, %v1567
        %v1569 = vpop.f32.mrf.mxu0
        %1570 = vmatprep.mubr.f32.mxu0 0.0
        %1571 = vmatmul.mubr.f32.gmra.mxu0 %v1426
        %v1572 = vpop.f32.mrf.mxu0
        %v1573 = vadd.f32 0.0, %v1572
        %v1574 = vpop.f32.mrf.mxu0
        %1575 = vdwg.mxu0
        %v1576 = vadd.f32 %v1404, %v1498
        %v1577 = vadd.f32 %v1405, %v1503
        %v1578 = vadd.f32 %v1406, %v1508
        %v1579 = vadd.f32 %v1407, %v1513
        %v1580 = vadd.f32 %v1408, %v1518
        %v1581 = vadd.f32 %v1409, %v1523
        %v1582 = vadd.f32 %v1410, %v1528
        %v1583 = vadd.f32 %v1411, %v1533
        %v1584 = vadd.f32 %v1412, %v1538
        %v1585 = vadd.f32 %v1413, %v1543
        %v1586 = vadd.f32 %v1414, %v1548
        %v1587 = vadd.f32 %v1415, %v1553
        %v1588 = vadd.f32 %v1416, %v1558
        %v1589 = vadd.f32 %v1417, %v1563
        %v1590 = vadd.f32 %v1418, %v1568
        %v1591 = vadd.f32 %v1419, %v1573
        %v1593 = vrot.slane %v225, 1
        %v1594 = vrot.slane %v226, 1
        %v1595 = vsel %vm253, %v1593, %v1594
        %v1596 = vrot.slane %v227, 1
        %v1597 = vsel %vm253, %v1594, %v1596
        %s1598 = scalar_lea.vmem %s1, 28
        %v1599 = vld [vmem:[%s1598] sm:$0xf]
        %v1600 = vsel %vm296, %v1595, 0
        %v1602 = vsel %vm296, %v1597, 0
        %v1605 = vsel %vm329, %v1599, 0
        %1607 = vmatprep.subr.mxu0 0.0
        %1608 = vmatpush1.msra.mxu0 0.0
        %1609 = vmatprep.subr.mxu0 0.0
        %1610 = vmatpush1.msra.mxu0 0.0
        %1611 = vmatprep.subr.mxu0 0.0
        %1612 = vmatpush1.msra.mxu0 0.0
        %1613 = vmatprep.subr.mxu0 0.0
        %1614 = vmatpush1.msra.mxu0 0.0
        %1615 = vmatprep.subr.mxu0 0.0
        %1616 = vmatpush1.msra.mxu0 0.0
        %1617 = vmatprep.subr.mxu0 0.0
        %1618 = vmatpush1.msra.mxu0 0.0
        %1619 = vmatprep.subr.mxu0 0.0
        %1620 = vmatpush1.msra.mxu0 0.0
        %1621 = vmatprep.subr.mxu0 0.0
        %1622 = vmatpush1.msra.mxu0 0.0
        %1623 = vmatprep.subr.mxu0 0.0
        %1624 = vmatpush1.msra.mxu0 0.0
        %1625 = vmatprep.subr.mxu0 0.0
        %1626 = vmatpush1.msra.mxu0 0.0
        %1627 = vmatprep.subr.mxu0 0.0
        %1628 = vmatpush1.msra.mxu0 0.0
        %1629 = vmatprep.subr.mxu0 0.0
        %1630 = vmatpush1.msra.mxu0 0.0
        %1631 = vmatprep.subr.mxu0 0.0
        %1632 = vmatpush1.msra.mxu0 0.0
        %1633 = vmatprep.subr.mxu0 0.0
        %1634 = vmatpush1.msra.mxu0 0.0
        %1635 = vmatprep.subr.mxu0 0.0
        %1636 = vmatpush1.msra.mxu0 0.0
        %1637 = vmatprep.subr.mxu0 0.0
        %1638 = vmatpush1.msra.mxu0 %v1605
        %1639 = vmatprep.subr.mxu0 0.0
        %1640 = vmatpush2.msra.mxu0 0.0
        %1641 = vmatprep.subr.mxu0 0.0
        %1642 = vmatpush2.msra.mxu0 0.0
        %1643 = vmatprep.subr.mxu0 0.0
        %1644 = vmatpush2.msra.mxu0 0.0
        %1645 = vmatprep.subr.mxu0 0.0
        %1646 = vmatpush2.msra.mxu0 0.0
        %1647 = vmatprep.subr.mxu0 0.0
        %1648 = vmatpush2.msra.mxu0 0.0
        %1649 = vmatprep.subr.mxu0 0.0
        %1650 = vmatpush2.msra.mxu0 0.0
        %1651 = vmatprep.subr.mxu0 0.0
        %1652 = vmatpush2.msra.mxu0 0.0
        %1653 = vmatprep.subr.mxu0 0.0
        %1654 = vmatpush2.msra.mxu0 0.0
        %1655 = vmatprep.subr.mxu0 0.0
        %1656 = vmatpush2.msra.mxu0 0.0
        %1657 = vmatprep.subr.mxu0 0.0
        %1658 = vmatpush2.msra.mxu0 0.0
        %1659 = vmatprep.subr.mxu0 0.0
        %1660 = vmatpush2.msra.mxu0 0.0
        %1661 = vmatprep.subr.mxu0 0.0
        %1662 = vmatpush2.msra.mxu0 0.0
        %1663 = vmatprep.subr.mxu0 0.0
        %1664 = vmatpush2.msra.mxu0 0.0
        %1665 = vmatprep.subr.mxu0 0.0
        %1666 = vmatpush2.msra.mxu0 0.0
        %1667 = vmatprep.subr.mxu0 0.0
        %1668 = vmatpush2.msra.mxu0 0.0
        %1669 = vmatprep.subr.mxu0 0.0
        %1670 = vmatpush2.msra.mxu0 0.0
        %1671 = vmatprep.mubr.f32.mxu0 0.0
        %1672 = vmatmul.mubr.f32.gmra.mxu0 %v305
        %v1673 = vpop.f32.mrf.mxu0
        %v1674 = vadd.f32 0.0, %v1673
        %v1675 = vpop.f32.mrf.mxu0
        %1676 = vmatprep.mubr.f32.mxu0 0.0
        %1677 = vmatmul.mubr.f32.gmra.mxu0 %v307
        %v1678 = vpop.f32.mrf.mxu0
        %v1679 = vadd.f32 0.0, %v1678
        %v1680 = vpop.f32.mrf.mxu0
        %1681 = vmatprep.mubr.f32.mxu0 0.0
        %1682 = vmatmul.mubr.f32.gmra.mxu0 %v309
        %v1683 = vpop.f32.mrf.mxu0
        %v1684 = vadd.f32 0.0, %v1683
        %v1685 = vpop.f32.mrf.mxu0
        %1686 = vmatprep.mubr.f32.mxu0 0.0
        %1687 = vmatmul.mubr.f32.gmra.mxu0 %v311
        %v1688 = vpop.f32.mrf.mxu0
        %v1689 = vadd.f32 0.0, %v1688
        %v1690 = vpop.f32.mrf.mxu0
        %1691 = vmatprep.mubr.f32.mxu0 0.0
        %1692 = vmatmul.mubr.f32.gmra.mxu0 %v313
        %v1693 = vpop.f32.mrf.mxu0
        %v1694 = vadd.f32 0.0, %v1693
        %v1695 = vpop.f32.mrf.mxu0
        %1696 = vmatprep.mubr.f32.mxu0 0.0
        %1697 = vmatmul.mubr.f32.gmra.mxu0 %v315
        %v1698 = vpop.f32.mrf.mxu0
        %v1699 = vadd.f32 0.0, %v1698
        %v1700 = vpop.f32.mrf.mxu0
        %1701 = vmatprep.mubr.f32.mxu0 0.0
        %1702 = vmatmul.mubr.f32.gmra.mxu0 %v317
        %v1703 = vpop.f32.mrf.mxu0
        %v1704 = vadd.f32 0.0, %v1703
        %v1705 = vpop.f32.mrf.mxu0
        %1706 = vmatprep.mubr.f32.mxu0 0.0
        %1707 = vmatmul.mubr.f32.gmra.mxu0 %v319
        %v1708 = vpop.f32.mrf.mxu0
        %v1709 = vadd.f32 0.0, %v1708
        %v1710 = vpop.f32.mrf.mxu0
        %1711 = vmatprep.mubr.f32.mxu0 0.0
        %1712 = vmatmul.mubr.f32.gmra.mxu0 %v321
        %v1713 = vpop.f32.mrf.mxu0
        %v1714 = vadd.f32 0.0, %v1713
        %v1715 = vpop.f32.mrf.mxu0
        %1716 = vmatprep.mubr.f32.mxu0 0.0
        %1717 = vmatmul.mubr.f32.gmra.mxu0 %v323
        %v1718 = vpop.f32.mrf.mxu0
        %v1719 = vadd.f32 0.0, %v1718
        %v1720 = vpop.f32.mrf.mxu0
        %1721 = vmatprep.mubr.f32.mxu0 0.0
        %1722 = vmatmul.mubr.f32.gmra.mxu0 %v325
        %v1723 = vpop.f32.mrf.mxu0
        %v1724 = vadd.f32 0.0, %v1723
        %v1725 = vpop.f32.mrf.mxu0
        %1726 = vmatprep.mubr.f32.mxu0 0.0
        %1727 = vmatmul.mubr.f32.gmra.mxu0 %v327
        %v1728 = vpop.f32.mrf.mxu0
        %v1729 = vadd.f32 0.0, %v1728
        %v1730 = vpop.f32.mrf.mxu0
        %1731 = vmatprep.mubr.f32.mxu0 0.0
        %1732 = vmatmul.mubr.f32.gmra.mxu0 %v1077
        %v1733 = vpop.f32.mrf.mxu0
        %v1734 = vadd.f32 0.0, %v1733
        %v1735 = vpop.f32.mrf.mxu0
        %1736 = vmatprep.mubr.f32.mxu0 0.0
        %1737 = vmatmul.mubr.f32.gmra.mxu0 %v1079
        %v1738 = vpop.f32.mrf.mxu0
        %v1739 = vadd.f32 0.0, %v1738
        %v1740 = vpop.f32.mrf.mxu0
        %1741 = vmatprep.mubr.f32.mxu0 0.0
        %1742 = vmatmul.mubr.f32.gmra.mxu0 %v1600
        %v1743 = vpop.f32.mrf.mxu0
        %v1744 = vadd.f32 0.0, %v1743
        %v1745 = vpop.f32.mrf.mxu0
        %1746 = vmatprep.mubr.f32.mxu0 0.0
        %1747 = vmatmul.mubr.f32.gmra.mxu0 %v1602
        %v1748 = vpop.f32.mrf.mxu0
        %v1749 = vadd.f32 0.0, %v1748
        %v1750 = vpop.f32.mrf.mxu0
        %1751 = vdwg.mxu0
        %v1752 = vadd.f32 %v1576, %v1674
        %v1753 = vadd.f32 %v1577, %v1679
        %v1754 = vadd.f32 %v1578, %v1684
        %v1755 = vadd.f32 %v1579, %v1689
        %v1756 = vadd.f32 %v1580, %v1694
        %v1757 = vadd.f32 %v1581, %v1699
        %v1758 = vadd.f32 %v1582, %v1704
        %v1759 = vadd.f32 %v1583, %v1709
        %v1760 = vadd.f32 %v1584, %v1714
        %v1761 = vadd.f32 %v1585, %v1719
        %v1762 = vadd.f32 %v1586, %v1724
        %v1763 = vadd.f32 %v1587, %v1729
        %v1764 = vadd.f32 %v1588, %v1734
        %v1765 = vadd.f32 %v1589, %v1739
        %v1766 = vadd.f32 %v1590, %v1744
        %v1767 = vadd.f32 %v1591, %v1749
        %v1768 = vrot.slane %v225, 2
        %v1769 = vrot.slane %v226, 2
        %v1770 = vsel %vm658, %v1768, %v1769
        %v1771 = vrot.slane %v227, 2
        %v1772 = vsel %vm658, %v1769, %v1771
        %s1773 = scalar_lea.vmem %s1, 32
        %v1774 = vld [vmem:[%s1773] sm:$0xf]
        %v1775 = vsel %vm296, %v1770, 0
        %v1777 = vsel %vm296, %v1772, 0
        %v1780 = vsel %vm329, %v1774, 0
        %1782 = vmatprep.subr.mxu0 0.0
        %1783 = vmatpush1.msra.mxu0 0.0
        %1784 = vmatprep.subr.mxu0 0.0
        %1785 = vmatpush1.msra.mxu0 0.0
        %1786 = vmatprep.subr.mxu0 0.0
        %1787 = vmatpush1.msra.mxu0 0.0
        %1788 = vmatprep.subr.mxu0 0.0
        %1789 = vmatpush1.msra.mxu0 0.0
        %1790 = vmatprep.subr.mxu0 0.0
        %1791 = vmatpush1.msra.mxu0 0.0
        %1792 = vmatprep.subr.mxu0 0.0
        %1793 = vmatpush1.msra.mxu0 0.0
        %1794 = vmatprep.subr.mxu0 0.0
        %1795 = vmatpush1.msra.mxu0 0.0
        %1796 = vmatprep.subr.mxu0 0.0
        %1797 = vmatpush1.msra.mxu0 0.0
        %1798 = vmatprep.subr.mxu0 0.0
        %1799 = vmatpush1.msra.mxu0 0.0
        %1800 = vmatprep.subr.mxu0 0.0
        %1801 = vmatpush1.msra.mxu0 0.0
        %1802 = vmatprep.subr.mxu0 0.0
        %1803 = vmatpush1.msra.mxu0 0.0
        %1804 = vmatprep.subr.mxu0 0.0
        %1805 = vmatpush1.msra.mxu0 0.0
        %1806 = vmatprep.subr.mxu0 0.0
        %1807 = vmatpush1.msra.mxu0 0.0
        %1808 = vmatprep.subr.mxu0 0.0
        %1809 = vmatpush1.msra.mxu0 0.0
        %1810 = vmatprep.subr.mxu0 0.0
        %1811 = vmatpush1.msra.mxu0 0.0
        %1812 = vmatprep.subr.mxu0 0.0
        %1813 = vmatpush1.msra.mxu0 %v1780
        %1814 = vmatprep.subr.mxu0 0.0
        %1815 = vmatpush2.msra.mxu0 0.0
        %1816 = vmatprep.subr.mxu0 0.0
        %1817 = vmatpush2.msra.mxu0 0.0
        %1818 = vmatprep.subr.mxu0 0.0
        %1819 = vmatpush2.msra.mxu0 0.0
        %1820 = vmatprep.subr.mxu0 0.0
        %1821 = vmatpush2.msra.mxu0 0.0
        %1822 = vmatprep.subr.mxu0 0.0
        %1823 = vmatpush2.msra.mxu0 0.0
        %1824 = vmatprep.subr.mxu0 0.0
        %1825 = vmatpush2.msra.mxu0 0.0
        %1826 = vmatprep.subr.mxu0 0.0
        %1827 = vmatpush2.msra.mxu0 0.0
        %1828 = vmatprep.subr.mxu0 0.0
        %1829 = vmatpush2.msra.mxu0 0.0
        %1830 = vmatprep.subr.mxu0 0.0
        %1831 = vmatpush2.msra.mxu0 0.0
        %1832 = vmatprep.subr.mxu0 0.0
        %1833 = vmatpush2.msra.mxu0 0.0
        %1834 = vmatprep.subr.mxu0 0.0
        %1835 = vmatpush2.msra.mxu0 0.0
        %1836 = vmatprep.subr.mxu0 0.0
        %1837 = vmatpush2.msra.mxu0 0.0
        %1838 = vmatprep.subr.mxu0 0.0
        %1839 = vmatpush2.msra.mxu0 0.0
        %1840 = vmatprep.subr.mxu0 0.0
        %1841 = vmatpush2.msra.mxu0 0.0
        %1842 = vmatprep.subr.mxu0 0.0
        %1843 = vmatpush2.msra.mxu0 0.0
        %1844 = vmatprep.subr.mxu0 0.0
        %1845 = vmatpush2.msra.mxu0 0.0
        %1846 = vmatprep.mubr.f32.mxu0 0.0
        %1847 = vmatmul.mubr.f32.gmra.mxu0 %v709
        %v1848 = vpop.f32.mrf.mxu0
        %v1849 = vadd.f32 0.0, %v1848
        %v1850 = vpop.f32.mrf.mxu0
        %1851 = vmatprep.mubr.f32.mxu0 0.0
        %1852 = vmatmul.mubr.f32.gmra.mxu0 %v711
        %v1853 = vpop.f32.mrf.mxu0
        %v1854 = vadd.f32 0.0, %v1853
        %v1855 = vpop.f32.mrf.mxu0
        %1856 = vmatprep.mubr.f32.mxu0 0.0
        %1857 = vmatmul.mubr.f32.gmra.mxu0 %v713
        %v1858 = vpop.f32.mrf.mxu0
        %v1859 = vadd.f32 0.0, %v1858
        %v1860 = vpop.f32.mrf.mxu0
        %1861 = vmatprep.mubr.f32.mxu0 0.0
        %1862 = vmatmul.mubr.f32.gmra.mxu0 %v715
        %v1863 = vpop.f32.mrf.mxu0
        %v1864 = vadd.f32 0.0, %v1863
        %v1865 = vpop.f32.mrf.mxu0
        %1866 = vmatprep.mubr.f32.mxu0 0.0
        %1867 = vmatmul.mubr.f32.gmra.mxu0 %v717
        %v1868 = vpop.f32.mrf.mxu0
        %v1869 = vadd.f32 0.0, %v1868
        %v1870 = vpop.f32.mrf.mxu0
        %1871 = vmatprep.mubr.f32.mxu0 0.0
        %1872 = vmatmul.mubr.f32.gmra.mxu0 %v719
        %v1873 = vpop.f32.mrf.mxu0
        %v1874 = vadd.f32 0.0, %v1873
        %v1875 = vpop.f32.mrf.mxu0
        %1876 = vmatprep.mubr.f32.mxu0 0.0
        %1877 = vmatmul.mubr.f32.gmra.mxu0 %v721
        %v1878 = vpop.f32.mrf.mxu0
        %v1879 = vadd.f32 0.0, %v1878
        %v1880 = vpop.f32.mrf.mxu0
        %1881 = vmatprep.mubr.f32.mxu0 0.0
        %1882 = vmatmul.mubr.f32.gmra.mxu0 %v723
        %v1883 = vpop.f32.mrf.mxu0
        %v1884 = vadd.f32 0.0, %v1883
        %v1885 = vpop.f32.mrf.mxu0
        %1886 = vmatprep.mubr.f32.mxu0 0.0
        %1887 = vmatmul.mubr.f32.gmra.mxu0 %v725
        %v1888 = vpop.f32.mrf.mxu0
        %v1889 = vadd.f32 0.0, %v1888
        %v1890 = vpop.f32.mrf.mxu0
        %1891 = vmatprep.mubr.f32.mxu0 0.0
        %1892 = vmatmul.mubr.f32.gmra.mxu0 %v727
        %v1893 = vpop.f32.mrf.mxu0
        %v1894 = vadd.f32 0.0, %v1893
        %v1895 = vpop.f32.mrf.mxu0
        %1896 = vmatprep.mubr.f32.mxu0 0.0
        %1897 = vmatmul.mubr.f32.gmra.mxu0 %v729
        %v1898 = vpop.f32.mrf.mxu0
        %v1899 = vadd.f32 0.0, %v1898
        %v1900 = vpop.f32.mrf.mxu0
        %1901 = vmatprep.mubr.f32.mxu0 0.0
        %1902 = vmatmul.mubr.f32.gmra.mxu0 %v731
        %v1903 = vpop.f32.mrf.mxu0
        %v1904 = vadd.f32 0.0, %v1903
        %v1905 = vpop.f32.mrf.mxu0
        %1906 = vmatprep.mubr.f32.mxu0 0.0
        %1907 = vmatmul.mubr.f32.gmra.mxu0 %v1252
        %v1908 = vpop.f32.mrf.mxu0
        %v1909 = vadd.f32 0.0, %v1908
        %v1910 = vpop.f32.mrf.mxu0
        %1911 = vmatprep.mubr.f32.mxu0 0.0
        %1912 = vmatmul.mubr.f32.gmra.mxu0 %v1254
        %v1913 = vpop.f32.mrf.mxu0
        %v1914 = vadd.f32 0.0, %v1913
        %v1915 = vpop.f32.mrf.mxu0
        %1916 = vmatprep.mubr.f32.mxu0 0.0
        %1917 = vmatmul.mubr.f32.gmra.mxu0 %v1775
        %v1918 = vpop.f32.mrf.mxu0
        %v1919 = vadd.f32 0.0, %v1918
        %v1920 = vpop.f32.mrf.mxu0
        %1921 = vmatprep.mubr.f32.mxu0 0.0
        %1922 = vmatmul.mubr.f32.gmra.mxu0 %v1777
        %v1923 = vpop.f32.mrf.mxu0
        %v1924 = vadd.f32 0.0, %v1923
        %v1925 = vpop.f32.mrf.mxu0
        %1926 = vdwg.mxu0
        %v1927 = vadd.f32 %v1752, %v1849
        %v1928 = vadd.f32 %v1753, %v1854
        %v1929 = vadd.f32 %v1754, %v1859
        %v1930 = vadd.f32 %v1755, %v1864
        %v1931 = vadd.f32 %v1756, %v1869
        %v1932 = vadd.f32 %v1757, %v1874
        %v1933 = vadd.f32 %v1758, %v1879
        %v1934 = vadd.f32 %v1759, %v1884
        %v1935 = vadd.f32 %v1760, %v1889
        %v1936 = vadd.f32 %v1761, %v1894
        %v1937 = vadd.f32 %v1762, %v1899
        %v1938 = vadd.f32 %v1763, %v1904
        %v1939 = vadd.f32 %v1764, %v1909
        %v1940 = vadd.f32 %v1765, %v1914
        %v1941 = vadd.f32 %v1766, %v1919
        %v1942 = vadd.f32 %v1767, %v1924
        %v1943 = vld [vmem:[%s2] sm:$0x1]
        %v1945 = vlaneseq
        %v1946 = vshrl.u32 %v1945, 7
        %v1947 = vsub.s32 0, %v1946
        %v1948 = vrot.slane %v1943, %v1947
        %v1950 = vadd.f32 %v1927, %v1948
        %v1951 = vadd.f32 %v1928, %v1948
        %v1952 = vadd.f32 %v1929, %v1948
        %v1953 = vadd.f32 %v1930, %v1948
        %v1954 = vadd.f32 %v1931, %v1948
        %v1955 = vadd.f32 %v1932, %v1948
        %v1956 = vadd.f32 %v1933, %v1948
        %v1957 = vadd.f32 %v1934, %v1948
        %v1958 = vadd.f32 %v1935, %v1948
        %v1959 = vadd.f32 %v1936, %v1948
        %v1960 = vadd.f32 %v1937, %v1948
        %v1961 = vadd.f32 %v1938, %v1948
        %v1962 = vadd.f32 %v1939, %v1948
        %v1963 = vadd.f32 %v1940, %v1948
        %v1964 = vadd.f32 %v1941, %v1948
        %v1965 = vadd.f32 %v1942, %v1948
        %v1966 = vmax.f32 %v1950, 0.0
        %v1967 = vmax.f32 %v1951, 0.0
        %v1968 = vmax.f32 %v1952, 0.0
        %v1969 = vmax.f32 %v1953, 0.0
        %v1970 = vmax.f32 %v1954, 0.0
        %v1971 = vmax.f32 %v1955, 0.0
        %v1972 = vmax.f32 %v1956, 0.0
        %v1973 = vmax.f32 %v1957, 0.0
        %v1974 = vmax.f32 %v1958, 0.0
        %v1975 = vmax.f32 %v1959, 0.0
        %v1976 = vmax.f32 %v1960, 0.0
        %v1977 = vmax.f32 %v1961, 0.0
        %v1978 = vmax.f32 %v1962, 0.0
        %v1979 = vmax.f32 %v1963, 0.0
        %v1980 = vmax.f32 %v1964, 0.0
        %v1981 = vmax.f32 %v1965, 0.0
        %vm1982 = vcmask 130048
        %1983 = vst.msk [vmem:[%s187] sm:$0xff] %vm1982, %v1966
        %1984 = vst.msk [vmem:[%s187 + $0x8] sm:$0xff] %vm1982, %v1967
        %1985 = vst.msk [vmem:[%s187 + $0x10] sm:$0xff] %vm1982, %v1968
        %1986 = vst.msk [vmem:[%s187 + $0x18] sm:$0xff] %vm1982, %v1969
        %1987 = vst.msk [vmem:[%s187 + $0x20] sm:$0xff] %vm1982, %v1970
        %1988 = vst.msk [vmem:[%s187 + $0x28] sm:$0xff] %vm1982, %v1971
        %1989 = vst.msk [vmem:[%s187 + $0x30] sm:$0xff] %vm1982, %v1972
        %1990 = vst.msk [vmem:[%s187 + $0x38] sm:$0xff] %vm1982, %v1973
        %1991 = vst.msk [vmem:[%s187 + $0x40] sm:$0xff] %vm1982, %v1974
        %1992 = vst.msk [vmem:[%s187 + $0x48] sm:$0xff] %vm1982, %v1975
        %1993 = vst.msk [vmem:[%s187 + $0x50] sm:$0xff] %vm1982, %v1976
        %1994 = vst.msk [vmem:[%s187 + $0x58] sm:$0xff] %vm1982, %v1977
        %1995 = vst.msk [vmem:[%s187 + $0x60] sm:$0xff] %vm1982, %v1978
        %1996 = vst.msk [vmem:[%s187 + $0x68] sm:$0xff] %vm1982, %v1979
        %1997 = vst.msk [vmem:[%s187 + $0x70] sm:$0xff] %vm1982, %v1980
        %1998 = vst.msk [vmem:[%s187 + $0x78] sm:$0xff] %vm1982, %v1981
        %s1999 = sand.u32 %s109, 1
        %s2000 = scalar_lea.sflag [#allocation3], %s1999
        %s2001 = sand.u32 %s109, 1
        %s2002 = smul.addr %s2001, 128
        %s2003 = scalar_lea.vmem [#allocation2], %s2002
        // Predicated region
        $region33: #{tpu_custom_call.1} parent=31 // pred_check
          %p2004 = pneg %p119
        $region34: #{tpu_custom_call.1} parent=31 // pred_check_branch
          %2006 = sbr.rel (%p2004) target = $region36
        $region35: #{tpu_custom_call.1} parent=31 // pred_region
          %s2007 = smul.u32 8, %s22
          %s2009 = ssub.s32 2048, 2048
          %2010 = vsyncadd %s2000, %s2009
          %s2011 = smul.addr %s2007, 2
          %s2012 = smul.addr %s21, 32
          %s2013 = sadd.s32 %s2011, %s2012
          %s2014 = smul.addr %s2013, 128
          %s2015 = scalar_lea.hbm %s3, %s2014
          %s2016 = sshll.u32 %s2003, 4
          %s2017 = int_to_ptr.vmem [resolvable:$true] %s2016
          %2022 = dma.vmem_to_hbm [thread:$0]  %s2017, 2048, %s2015, %s2000, 128, 128, 8
        $region36: #{tpu_custom_call.1} parent=31 // pred_fallthru
          _
      $region32: #{tpu_custom_call.1} parent=5 // pred_fallthru
        _
      %p2023 = scmp.le.s32.totalorder 2, %s12
      // Predicated region
      $region37: #{tpu_custom_call.1} parent=5 // pred_check
        %p2024 = pneg %p2023
      $region38: #{tpu_custom_call.1} parent=5 // pred_check_branch
        %2026 = sbr.rel (%p2024) target = $region40
      $region39: #{tpu_custom_call.1} parent=5 // pred_region
        %s2027 = ssub.s32 %s12, 2
        // Predicated region
        $region41: #{tpu_custom_call.1} parent=39 // pred_check
          %p2028 = pneg %p125
        $region42: #{tpu_custom_call.1} parent=39 // pred_check_branch
          %2030 = sbr.rel (%p2028) target = $region44
        $region43: #{tpu_custom_call.1} parent=39 // pred_region
          %s2031 = sand.u32 %s110, 1
          %s2032 = scalar_lea.sflag [#allocation3], %s2031
          %s2033 = sand.u32 %s110, 1
          %s2034 = smul.addr %s2033, 128
          %s2035 = scalar_lea.vmem [#allocation2], %s2034
          %2036 = dma.done %s2032, 2048
        $region44: #{tpu_custom_call.1} parent=39 // pred_fallthru
          _
      $region40: #{tpu_custom_call.1} parent=5 // pred_fallthru
        _
    $region6: #{tpu_custom_call.1} parent=1 // loop_footer
      %s16 = sadd.s32 1, %s12
    $region7: #{tpu_custom_call.1} parent=1 // loop_footer_branch
      %11 = sbr.rel target = $region3
    $region8: #{tpu_custom_call.1} parent=1 // loop_exit
      _
    %2037 = vsyncpa [#allocation3], 1
    %s2038 = scalar_lea.sflag [#allocation3], 1
    %2039 = vsyncpa %s2038, 1

</llo_original>
